<compile_context>
chip_gen: v6e
topology: v6e:2x2x1
jax: 0.10.0
libtpu: 0.0.40
codegen_flags: <defaults>
</compile_context>

<pallas_src>
import functools

import jax
import jax.numpy as jnp
from jax.experimental import pallas as pl
from jax.experimental.pallas import tpu as pltpu


def _conv_relu_kernel(w_ref, x_ref, o_ref, *, n_batch, kh_kw, wp, hwp):
    """Fused conv-as-shifted-GEMM + ReLU over the whole batch (one grid step).

    w_ref: (KH*KW, Cout, Cin)  tap-major weight, resident in VMEM
    x_ref: (N, Cin, L)         zero-padded input, flattened padded plane
                               (L = Hp*Wp + max tap offset)
    o_ref: (N, Cout, Hp*Wp)    conv+ReLU on the padded plane (wrapper crops)
    """
    kh_n, kw_n = kh_kw
    for n in range(n_batch):                       # static unroll (N is tiny)
        x_n = x_ref[n]                             # (Cin, L), loaded once
        acc = None
        for i in range(kh_n):
            for j in range(kw_n):
                tap_off = i * wp + j               # shift on the padded plane
                tap = x_n[:, tap_off:tap_off + hwp]            # (Cin, Hp*Wp)
                contrib = jnp.dot(w_ref[i * kw_n + j], tap,
                                  preferred_element_type=jnp.float32)
                acc = contrib if acc is None else acc + contrib
        o_ref[n] = jnp.maximum(acc, 0.0).astype(o_ref.dtype)   # ReLU epilogue


def basic_conv_forward(x_nchw, weight_oihw, *, stride=1, padding=1, dilation=1):
    """BasicConv.forward: relu(conv2d(x, weight, bias=None)).

    x_nchw:      (N, Cin, H, W)        float32 (PyTorch NCHW)
    weight_oihw: (Cout, Cin, KH, KW)   float32 (PyTorch OIHW)
    returns:     (N, Cout, H_out, W_out) float32, NCHW
    """
    N, Cin, H, W = x_nchw.shape
    Cout, Cin_w, KH, KW = weight_oihw.shape
    assert Cin == Cin_w, "kernel assumes groups=1"
    assert stride == 1, "kernel specialized for stride=1"
    assert dilation == 1, "kernel specialized for dilation=1"
    assert padding >= 0, "kernel assumes symmetric non-negative padding"

    Hp, Wp = H + 2 * padding, W + 2 * padding
    H_out, W_out = Hp - KH + 1, Wp - KW + 1
    assert H_out > 0 and W_out > 0, "kernel smaller than padded input required"
    HWp = Hp * Wp
    tail = (KH - 1) * Wp + (KW - 1)     # largest in-kernel tap offset
    L = HWp + tail

    # Zero-pad spatially, flatten the padded plane, add `tail` trailing zeros
    # so every tap slice [off : off+HWp] stays in bounds.  ~1.3x input bytes
    # of HBM traffic vs the 9x of an HBM-materialized im2col.
    x_pad = jnp.pad(
        x_nchw, ((0, 0), (0, 0), (padding, padding), (padding, padding)))
    x_flat = jnp.pad(x_pad.reshape(N, Cin, HWp), ((0, 0), (0, 0), (0, tail)))

    # Tap-major weight: w_kk[kh*KW + kw] is the (Cout, Cin) slice paired with
    # the tap at flat offset kh*Wp + kw.
    w_kk = jnp.transpose(weight_oihw, (2, 3, 0, 1)).reshape(KH * KW, Cout, Cin)

    kernel = functools.partial(_conv_relu_kernel, n_batch=N, kh_kw=(KH, KW),
                               wp=Wp, hwp=HWp)

    itemsize = jnp.dtype(x_nchw.dtype).itemsize
    cost = pl.CostEstimate(
        flops=2 * N * Cout * Cin * KH * KW * HWp,
        transcendentals=0,
        bytes_accessed=(w_kk.size + x_flat.size + N * Cout * HWp) * itemsize)

    out_flat = pl.pallas_call(
        kernel,
        out_shape=jax.ShapeDtypeStruct((N, Cout, HWp), x_nchw.dtype),
        grid_spec=pltpu.PrefetchScalarGridSpec(
            num_scalar_prefetch=0,
            grid=(1,),                       # single fused step: whole batch
            in_specs=[
                pl.BlockSpec((KH * KW, Cout, Cin), lambda i: (0, 0, 0)),
                pl.BlockSpec((N, Cin, L), lambda i: (0, 0, 0)),
            ],
            out_specs=pl.BlockSpec((N, Cout, HWp), lambda i: (0, 0, 0)),
        ),
        compiler_params=pltpu.CompilerParams(
            dimension_semantics=("arbitrary",)),
        cost_estimate=cost,
    )(w_kk, x_flat)

    # Free contiguous reshape + tiny static crop back to PyTorch NCHW.
    return out_flat.reshape(N, Cout, Hp, Wp)[:, :, :H_out, :W_out]


if __name__ == "__main__":
    key = jax.random.PRNGKey(0)
    k_x, k_w = jax.random.split(key)

    # BasicConv(in_channels=4, out_channels=8, kernel_size=3, stride=1,
    # padding=1), batch=2, spatial=16.
    N, Cin, H, W = 2, 4, 16, 16
    Cout, KH, KW = 8, 3, 3

    x = jax.random.normal(k_x, (N, Cin, H, W), dtype=jnp.float32)
    weight = jax.random.normal(k_w, (Cout, Cin, KH, KW), dtype=jnp.float32) * 0.1

    fwd = jax.jit(functools.partial(basic_conv_forward,
                                    stride=1, padding=1, dilation=1))
    out = jax.block_until_ready(fwd(x, weight))

    # Reference: plain-JAX conv (NCHW, OIHW) + ReLU.  BatchNorm intentionally
    # omitted — the PyTorch forward() never applies self.bn.
    ref = jax.lax.conv_general_dilated(
        x, weight, window_strides=(1, 1), padding=((1, 1), (1, 1)),
        dimension_numbers=("NCHW", "OIHW", "NCHW"))
    ref = jnp.maximum(ref, 0.0)

    assert out.shape == (N, Cout, H, W), out.shape
    assert jnp.allclose(out, ref, atol=1e-4, rtol=1e-4), "mismatch vs reference"

    print("KERNEL_OK")
</pallas_src>

<mosaic_0001>
module attributes {stable_mosaic.version = 11 : i64} {
  func.func @_conv_relu_kernel(%arg0: i32, %arg1: memref<9x8x4xf32, #tpu.memory_space<vmem>>, %arg2: memref<2x4x362xf32, #tpu.memory_space<vmem>>, %arg3: memref<2x8x324xf32, #tpu.memory_space<vmem>>) attributes {dimension_semantics = [#tpu.dimension_semantics<arbitrary>], iteration_bounds = array<i64: 1>, scalar_prefetch = 0 : i64, scratch_operands = 0 : i64, tpu.core_type = #tpu.core_type<tc>, window_params = [{pipeline_mode = #tpu.pipeline_mode<synchronous>, transform_indices = @transform_0, window_bounds = array<i64: 9, 8, 4>}, {pipeline_mode = #tpu.pipeline_mode<synchronous>, transform_indices = @transform_1, window_bounds = array<i64: 2, 4, 362>}, {pipeline_mode = #tpu.pipeline_mode<synchronous>, transform_indices = @transform_2, window_bounds = array<i64: 2, 8, 324>}]} {
    %c0 = arith.constant 0 : index
    %c0_0 = arith.constant 0 : index
    %c0_1 = arith.constant 0 : index
    %0 = vector.load %arg2[%c0, %c0_0, %c0_1] : memref<2x4x362xf32, #tpu.memory_space<vmem>>, vector<1x4x362xf32>
    %1 = vector.shape_cast %0 : vector<1x4x362xf32> to vector<4x362xf32>
    %2 = vector.extract_strided_slice %1 {offsets = [0, 0], sizes = [4, 324], strides = [1, 1]} : vector<4x362xf32> to vector<4x324xf32>
    %c0_2 = arith.constant 0 : index
    %c0_3 = arith.constant 0 : index
    %c0_4 = arith.constant 0 : index
    %3 = vector.load %arg1[%c0_2, %c0_3, %c0_4] : memref<9x8x4xf32, #tpu.memory_space<vmem>>, vector<1x8x4xf32>
    %4 = vector.shape_cast %3 : vector<1x8x4xf32> to vector<8x4xf32>
    %cst = arith.constant dense<0.000000e+00> : vector<8x324xf32>
    %5 = tpu.matmul %4, %2, %cst {dimension_numbers = #tpu.dot_dimension_numbers<[1], [0], [0], [1], [0, 0, 1, 1], [], []>} : vector<8x4xf32>, vector<4x324xf32>, vector<8x324xf32> -> vector<8x324xf32>
    %6 = vector.extract_strided_slice %1 {offsets = [0, 1], sizes = [4, 324], strides = [1, 1]} : vector<4x362xf32> to vector<4x324xf32>
    %c1 = arith.constant 1 : index
    %c0_5 = arith.constant 0 : index
    %c0_6 = arith.constant 0 : index
    %7 = vector.load %arg1[%c1, %c0_5, %c0_6] : memref<9x8x4xf32, #tpu.memory_space<vmem>>, vector<1x8x4xf32>
    %8 = vector.shape_cast %7 : vector<1x8x4xf32> to vector<8x4xf32>
    %cst_7 = arith.constant dense<0.000000e+00> : vector<8x324xf32>
    %9 = tpu.matmul %8, %6, %cst_7 {dimension_numbers = #tpu.dot_dimension_numbers<[1], [0], [0], [1], [0, 0, 1, 1], [], []>} : vector<8x4xf32>, vector<4x324xf32>, vector<8x324xf32> -> vector<8x324xf32>
    %10 = arith.addf %5, %9 : vector<8x324xf32>
    %11 = vector.extract_strided_slice %1 {offsets = [0, 2], sizes = [4, 324], strides = [1, 1]} : vector<4x362xf32> to vector<4x324xf32>
    %c2 = arith.constant 2 : index
    %c0_8 = arith.constant 0 : index
    %c0_9 = arith.constant 0 : index
    %12 = vector.load %arg1[%c2, %c0_8, %c0_9] : memref<9x8x4xf32, #tpu.memory_space<vmem>>, vector<1x8x4xf32>
    %13 = vector.shape_cast %12 : vector<1x8x4xf32> to vector<8x4xf32>
    %cst_10 = arith.constant dense<0.000000e+00> : vector<8x324xf32>
    %14 = tpu.matmul %13, %11, %cst_10 {dimension_numbers = #tpu.dot_dimension_numbers<[1], [0], [0], [1], [0, 0, 1, 1], [], []>} : vector<8x4xf32>, vector<4x324xf32>, vector<8x324xf32> -> vector<8x324xf32>
    %15 = arith.addf %10, %14 : vector<8x324xf32>
    %16 = vector.extract_strided_slice %1 {offsets = [0, 18], sizes = [4, 324], strides = [1, 1]} : vector<4x362xf32> to vector<4x324xf32>
    %c3 = arith.constant 3 : index
    %c0_11 = arith.constant 0 : index
    %c0_12 = arith.constant 0 : index
    %17 = vector.load %arg1[%c3, %c0_11, %c0_12] : memref<9x8x4xf32, #tpu.memory_space<vmem>>, vector<1x8x4xf32>
    %18 = vector.shape_cast %17 : vector<1x8x4xf32> to vector<8x4xf32>
    %cst_13 = arith.constant dense<0.000000e+00> : vector<8x324xf32>
    %19 = tpu.matmul %18, %16, %cst_13 {dimension_numbers = #tpu.dot_dimension_numbers<[1], [0], [0], [1], [0, 0, 1, 1], [], []>} : vector<8x4xf32>, vector<4x324xf32>, vector<8x324xf32> -> vector<8x324xf32>
    %20 = arith.addf %15, %19 : vector<8x324xf32>
    %21 = vector.extract_strided_slice %1 {offsets = [0, 19], sizes = [4, 324], strides = [1, 1]} : vector<4x362xf32> to vector<4x324xf32>
    %c4 = arith.constant 4 : index
    %c0_14 = arith.constant 0 : index
    %c0_15 = arith.constant 0 : index
    %22 = vector.load %arg1[%c4, %c0_14, %c0_15] : memref<9x8x4xf32, #tpu.memory_space<vmem>>, vector<1x8x4xf32>
    %23 = vector.shape_cast %22 : vector<1x8x4xf32> to vector<8x4xf32>
    %cst_16 = arith.constant dense<0.000000e+00> : vector<8x324xf32>
    %24 = tpu.matmul %23, %21, %cst_16 {dimension_numbers = #tpu.dot_dimension_numbers<[1], [0], [0], [1], [0, 0, 1, 1], [], []>} : vector<8x4xf32>, vector<4x324xf32>, vector<8x324xf32> -> vector<8x324xf32>
    %25 = arith.addf %20, %24 : vector<8x324xf32>
    %26 = vector.extract_strided_slice %1 {offsets = [0, 20], sizes = [4, 324], strides = [1, 1]} : vector<4x362xf32> to vector<4x324xf32>
    %c5 = arith.constant 5 : index
    %c0_17 = arith.constant 0 : index
    %c0_18 = arith.constant 0 : index
    %27 = vector.load %arg1[%c5, %c0_17, %c0_18] : memref<9x8x4xf32, #tpu.memory_space<vmem>>, vector<1x8x4xf32>
    %28 = vector.shape_cast %27 : vector<1x8x4xf32> to vector<8x4xf32>
    %cst_19 = arith.constant dense<0.000000e+00> : vector<8x324xf32>
    %29 = tpu.matmul %28, %26, %cst_19 {dimension_numbers = #tpu.dot_dimension_numbers<[1], [0], [0], [1], [0, 0, 1, 1], [], []>} : vector<8x4xf32>, vector<4x324xf32>, vector<8x324xf32> -> vector<8x324xf32>
    %30 = arith.addf %25, %29 : vector<8x324xf32>
    %31 = vector.extract_strided_slice %1 {offsets = [0, 36], sizes = [4, 324], strides = [1, 1]} : vector<4x362xf32> to vector<4x324xf32>
    %c6 = arith.constant 6 : index
    %c0_20 = arith.constant 0 : index
    %c0_21 = arith.constant 0 : index
    %32 = vector.load %arg1[%c6, %c0_20, %c0_21] : memref<9x8x4xf32, #tpu.memory_space<vmem>>, vector<1x8x4xf32>
    %33 = vector.shape_cast %32 : vector<1x8x4xf32> to vector<8x4xf32>
    %cst_22 = arith.constant dense<0.000000e+00> : vector<8x324xf32>
    %34 = tpu.matmul %33, %31, %cst_22 {dimension_numbers = #tpu.dot_dimension_numbers<[1], [0], [0], [1], [0, 0, 1, 1], [], []>} : vector<8x4xf32>, vector<4x324xf32>, vector<8x324xf32> -> vector<8x324xf32>
    %35 = arith.addf %30, %34 : vector<8x324xf32>
    %36 = vector.extract_strided_slice %1 {offsets = [0, 37], sizes = [4, 324], strides = [1, 1]} : vector<4x362xf32> to vector<4x324xf32>
    %c7 = arith.constant 7 : index
    %c0_23 = arith.constant 0 : index
    %c0_24 = arith.constant 0 : index
    %37 = vector.load %arg1[%c7, %c0_23, %c0_24] : memref<9x8x4xf32, #tpu.memory_space<vmem>>, vector<1x8x4xf32>
    %38 = vector.shape_cast %37 : vector<1x8x4xf32> to vector<8x4xf32>
    %cst_25 = arith.constant dense<0.000000e+00> : vector<8x324xf32>
    %39 = tpu.matmul %38, %36, %cst_25 {dimension_numbers = #tpu.dot_dimension_numbers<[1], [0], [0], [1], [0, 0, 1, 1], [], []>} : vector<8x4xf32>, vector<4x324xf32>, vector<8x324xf32> -> vector<8x324xf32>
    %40 = arith.addf %35, %39 : vector<8x324xf32>
    %41 = vector.extract_strided_slice %1 {offsets = [0, 38], sizes = [4, 324], strides = [1, 1]} : vector<4x362xf32> to vector<4x324xf32>
    %c8 = arith.constant 8 : index
    %c0_26 = arith.constant 0 : index
    %c0_27 = arith.constant 0 : index
    %42 = vector.load %arg1[%c8, %c0_26, %c0_27] : memref<9x8x4xf32, #tpu.memory_space<vmem>>, vector<1x8x4xf32>
    %43 = vector.shape_cast %42 : vector<1x8x4xf32> to vector<8x4xf32>
    %cst_28 = arith.constant dense<0.000000e+00> : vector<8x324xf32>
    %44 = tpu.matmul %43, %41, %cst_28 {dimension_numbers = #tpu.dot_dimension_numbers<[1], [0], [0], [1], [0, 0, 1, 1], [], []>} : vector<8x4xf32>, vector<4x324xf32>, vector<8x324xf32> -> vector<8x324xf32>
    %45 = arith.addf %40, %44 : vector<8x324xf32>
    %cst_29 = arith.constant 0.000000e+00 : f32
    %46 = vector.broadcast %cst_29 : f32 to vector<8x324xf32>
    %47 = arith.maximumf %45, %46 : vector<8x324xf32>
    %c0_30 = arith.constant 0 : index
    %c0_31 = arith.constant 0 : index
    %c0_32 = arith.constant 0 : index
    %48 = vector.load %arg3[%c0_30, %c0_31, %c0_32] : memref<2x8x324xf32, #tpu.memory_space<vmem>>, vector<1x8x324xf32>
    %49 = vector.shape_cast %48 : vector<1x8x324xf32> to vector<8x324xf32>
    %50 = vector.shape_cast %47 : vector<8x324xf32> to vector<1x8x324xf32>
    tpu.vector_store %arg3[%c0_30, %c0_31, %c0_32], %50 {strides = array<i32>} : memref<2x8x324xf32, #tpu.memory_space<vmem>>, vector<1x8x324xf32>,
    %c1_33 = arith.constant 1 : index
    %c0_34 = arith.constant 0 : index
    %c0_35 = arith.constant 0 : index
    %51 = vector.load %arg2[%c1_33, %c0_34, %c0_35] : memref<2x4x362xf32, #tpu.memory_space<vmem>>, vector<1x4x362xf32>
    %52 = vector.shape_cast %51 : vector<1x4x362xf32> to vector<4x362xf32>
    %53 = vector.extract_strided_slice %52 {offsets = [0, 0], sizes = [4, 324], strides = [1, 1]} : vector<4x362xf32> to vector<4x324xf32>
    %c0_36 = arith.constant 0 : index
    %c0_37 = arith.constant 0 : index
    %c0_38 = arith.constant 0 : index
    %54 = vector.load %arg1[%c0_36, %c0_37, %c0_38] : memref<9x8x4xf32, #tpu.memory_space<vmem>>, vector<1x8x4xf32>
    %55 = vector.shape_cast %54 : vector<1x8x4xf32> to vector<8x4xf32>
    %cst_39 = arith.constant dense<0.000000e+00> : vector<8x324xf32>
    %56 = tpu.matmul %55, %53, %cst_39 {dimension_numbers = #tpu.dot_dimension_numbers<[1], [0], [0], [1], [0, 0, 1, 1], [], []>} : vector<8x4xf32>, vector<4x324xf32>, vector<8x324xf32> -> vector<8x324xf32>
    %57 = vector.extract_strided_slice %52 {offsets = [0, 1], sizes = [4, 324], strides = [1, 1]} : vector<4x362xf32> to vector<4x324xf32>
    %c1_40 = arith.constant 1 : index
    %c0_41 = arith.constant 0 : index
    %c0_42 = arith.constant 0 : index
    %58 = vector.load %arg1[%c1_40, %c0_41, %c0_42] : memref<9x8x4xf32, #tpu.memory_space<vmem>>, vector<1x8x4xf32>
    %59 = vector.shape_cast %58 : vector<1x8x4xf32> to vector<8x4xf32>
    %cst_43 = arith.constant dense<0.000000e+00> : vector<8x324xf32>
    %60 = tpu.matmul %59, %57, %cst_43 {dimension_numbers = #tpu.dot_dimension_numbers<[1], [0], [0], [1], [0, 0, 1, 1], [], []>} : vector<8x4xf32>, vector<4x324xf32>, vector<8x324xf32> -> vector<8x324xf32>
    %61 = arith.addf %56, %60 : vector<8x324xf32>
    %62 = vector.extract_strided_slice %52 {offsets = [0, 2], sizes = [4, 324], strides = [1, 1]} : vector<4x362xf32> to vector<4x324xf32>
    %c2_44 = arith.constant 2 : index
    %c0_45 = arith.constant 0 : index
    %c0_46 = arith.constant 0 : index
    %63 = vector.load %arg1[%c2_44, %c0_45, %c0_46] : memref<9x8x4xf32, #tpu.memory_space<vmem>>, vector<1x8x4xf32>
    %64 = vector.shape_cast %63 : vector<1x8x4xf32> to vector<8x4xf32>
    %cst_47 = arith.constant dense<0.000000e+00> : vector<8x324xf32>
    %65 = tpu.matmul %64, %62, %cst_47 {dimension_numbers = #tpu.dot_dimension_numbers<[1], [0], [0], [1], [0, 0, 1, 1], [], []>} : vector<8x4xf32>, vector<4x324xf32>, vector<8x324xf32> -> vector<8x324xf32>
    %66 = arith.addf %61, %65 : vector<8x324xf32>
    %67 = vector.extract_strided_slice %52 {offsets = [0, 18], sizes = [4, 324], strides = [1, 1]} : vector<4x362xf32> to vector<4x324xf32>
    %c3_48 = arith.constant 3 : index
    %c0_49 = arith.constant 0 : index
    %c0_50 = arith.constant 0 : index
    %68 = vector.load %arg1[%c3_48, %c0_49, %c0_50] : memref<9x8x4xf32, #tpu.memory_space<vmem>>, vector<1x8x4xf32>
    %69 = vector.shape_cast %68 : vector<1x8x4xf32> to vector<8x4xf32>
    %cst_51 = arith.constant dense<0.000000e+00> : vector<8x324xf32>
    %70 = tpu.matmul %69, %67, %cst_51 {dimension_numbers = #tpu.dot_dimension_numbers<[1], [0], [0], [1], [0, 0, 1, 1], [], []>} : vector<8x4xf32>, vector<4x324xf32>, vector<8x324xf32> -> vector<8x324xf32>
    %71 = arith.addf %66, %70 : vector<8x324xf32>
    %72 = vector.extract_strided_slice %52 {offsets = [0, 19], sizes = [4, 324], strides = [1, 1]} : vector<4x362xf32> to vector<4x324xf32>
    %c4_52 = arith.constant 4 : index
    %c0_53 = arith.constant 0 : index
    %c0_54 = arith.constant 0 : index
    %73 = vector.load %arg1[%c4_52, %c0_53, %c0_54] : memref<9x8x4xf32, #tpu.memory_space<vmem>>, vector<1x8x4xf32>
    %74 = vector.shape_cast %73 : vector<1x8x4xf32> to vector<8x4xf32>
    %cst_55 = arith.constant dense<0.000000e+00> : vector<8x324xf32>
    %75 = tpu.matmul %74, %72, %cst_55 {dimension_numbers = #tpu.dot_dimension_numbers<[1], [0], [0], [1], [0, 0, 1, 1], [], []>} : vector<8x4xf32>, vector<4x324xf32>, vector<8x324xf32> -> vector<8x324xf32>
    %76 = arith.addf %71, %75 : vector<8x324xf32>
    %77 = vector.extract_strided_slice %52 {offsets = [0, 20], sizes = [4, 324], strides = [1, 1]} : vector<4x362xf32> to vector<4x324xf32>
    %c5_56 = arith.constant 5 : index
    %c0_57 = arith.constant 0 : index
    %c0_58 = arith.constant 0 : index
    %78 = vector.load %arg1[%c5_56, %c0_57, %c0_58] : memref<9x8x4xf32, #tpu.memory_space<vmem>>, vector<1x8x4xf32>
    %79 = vector.shape_cast %78 : vector<1x8x4xf32> to vector<8x4xf32>
    %cst_59 = arith.constant dense<0.000000e+00> : vector<8x324xf32>
    %80 = tpu.matmul %79, %77, %cst_59 {dimension_numbers = #tpu.dot_dimension_numbers<[1], [0], [0], [1], [0, 0, 1, 1], [], []>} : vector<8x4xf32>, vector<4x324xf32>, vector<8x324xf32> -> vector<8x324xf32>
    %81 = arith.addf %76, %80 : vector<8x324xf32>
    %82 = vector.extract_strided_slice %52 {offsets = [0, 36], sizes = [4, 324], strides = [1, 1]} : vector<4x362xf32> to vector<4x324xf32>
    %c6_60 = arith.constant 6 : index
    %c0_61 = arith.constant 0 : index
    %c0_62 = arith.constant 0 : index
    %83 = vector.load %arg1[%c6_60, %c0_61, %c0_62] : memref<9x8x4xf32, #tpu.memory_space<vmem>>, vector<1x8x4xf32>
    %84 = vector.shape_cast %83 : vector<1x8x4xf32> to vector<8x4xf32>
    %cst_63 = arith.constant dense<0.000000e+00> : vector<8x324xf32>
    %85 = tpu.matmul %84, %82, %cst_63 {dimension_numbers = #tpu.dot_dimension_numbers<[1], [0], [0], [1], [0, 0, 1, 1], [], []>} : vector<8x4xf32>, vector<4x324xf32>, vector<8x324xf32> -> vector<8x324xf32>
    %86 = arith.addf %81, %85 : vector<8x324xf32>
    %87 = vector.extract_strided_slice %52 {offsets = [0, 37], sizes = [4, 324], strides = [1, 1]} : vector<4x362xf32> to vector<4x324xf32>
    %c7_64 = arith.constant 7 : index
    %c0_65 = arith.constant 0 : index
    %c0_66 = arith.constant 0 : index
    %88 = vector.load %arg1[%c7_64, %c0_65, %c0_66] : memref<9x8x4xf32, #tpu.memory_space<vmem>>, vector<1x8x4xf32>
    %89 = vector.shape_cast %88 : vector<1x8x4xf32> to vector<8x4xf32>
    %cst_67 = arith.constant dense<0.000000e+00> : vector<8x324xf32>
    %90 = tpu.matmul %89, %87, %cst_67 {dimension_numbers = #tpu.dot_dimension_numbers<[1], [0], [0], [1], [0, 0, 1, 1], [], []>} : vector<8x4xf32>, vector<4x324xf32>, vector<8x324xf32> -> vector<8x324xf32>
    %91 = arith.addf %86, %90 : vector<8x324xf32>
    %92 = vector.extract_strided_slice %52 {offsets = [0, 38], sizes = [4, 324], strides = [1, 1]} : vector<4x362xf32> to vector<4x324xf32>
    %c8_68 = arith.constant 8 : index
    %c0_69 = arith.constant 0 : index
    %c0_70 = arith.constant 0 : index
    %93 = vector.load %arg1[%c8_68, %c0_69, %c0_70] : memref<9x8x4xf32, #tpu.memory_space<vmem>>, vector<1x8x4xf32>
    %94 = vector.shape_cast %93 : vector<1x8x4xf32> to vector<8x4xf32>
    %cst_71 = arith.constant dense<0.000000e+00> : vector<8x324xf32>
    %95 = tpu.matmul %94, %92, %cst_71 {dimension_numbers = #tpu.dot_dimension_numbers<[1], [0], [0], [1], [0, 0, 1, 1], [], []>} : vector<8x4xf32>, vector<4x324xf32>, vector<8x324xf32> -> vector<8x324xf32>
    %96 = arith.addf %91, %95 : vector<8x324xf32>
    %cst_72 = arith.constant 0.000000e+00 : f32
    %97 = vector.broadcast %cst_72 : f32 to vector<8x324xf32>
    %98 = arith.maximumf %96, %97 : vector<8x324xf32>
    %c1_73 = arith.constant 1 : index
    %c0_74 = arith.constant 0 : index
    %c0_75 = arith.constant 0 : index
    %99 = vector.load %arg3[%c1_73, %c0_74, %c0_75] : memref<2x8x324xf32, #tpu.memory_space<vmem>>, vector<1x8x324xf32>
    %100 = vector.shape_cast %99 : vector<1x8x324xf32> to vector<8x324xf32>
    %101 = vector.shape_cast %98 : vector<8x324xf32> to vector<1x8x324xf32>
    tpu.vector_store %arg3[%c1_73, %c0_74, %c0_75], %101 {strides = array<i32>} : memref<2x8x324xf32, #tpu.memory_space<vmem>>, vector<1x8x324xf32>,
    return
  }
  func.func @transform_0(%arg0: i32) -> (i32, i32, i32) {
    %c0_i32 = arith.constant 0 : i32
    %c0_i32_0 = arith.constant 0 : i32
    %c0_i32_1 = arith.constant 0 : i32
    %c0_i32_2 = arith.constant 0 : i32
    return %c0_i32, %c0_i32_0, %c0_i32_1 : i32, i32, i32
  }
  func.func @transform_1(%arg0: i32) -> (i32, i32, i32) {
    %c0_i32 = arith.constant 0 : i32
    %c0_i32_0 = arith.constant 0 : i32
    %c0_i32_1 = arith.constant 0 : i32
    %c0_i32_2 = arith.constant 0 : i32
    return %c0_i32, %c0_i32_0, %c0_i32_1 : i32, i32, i32
  }
  func.func @transform_2(%arg0: i32) -> (i32, i32, i32) {
    %c0_i32 = arith.constant 0 : i32
    %c0_i32_0 = arith.constant 0 : i32
    %c0_i32_1 = arith.constant 0 : i32
    %c0_i32_2 = arith.constant 0 : i32
    return %c0_i32, %c0_i32_0, %c0_i32_1 : i32, i32, i32
  }
}

</mosaic_0001>

<llo_original>
// kernel: basic_conv_forward.1
$region0: #{basic_conv_forward.1}
  #allocation0 [shape = 'u32[]', space=smem, size = 0x4, offset = 0x4, fixed_abs, tag = 'smem constant byte address 0x4 - core index']
  #allocation1 [shape = 'u32[144,128]{1,0:T(1,128)}', space=vmem, size = 0x12000, scoped, tag = 'internal scratch']
  %s0 = inlined_call_operand.vmem [shape: f32[9,8,4], index: 0, kind: input, shape index: {}]
  %s1 = inlined_call_operand.vmem [shape: f32[2,4,362], index: 1, kind: input, shape index: {}]
  %s2 = inlined_call_operand.vmem [shape: f32[2,8,324], index: 2, kind: output, shape index: {}]
  %s3 = sld [smem:[#allocation0]]
  $region18: #{basic_conv_forward.1} parent=0
    _
  %s5 = ssub.s32 1, %s3
  %s6 = scalar_select 0, %s5, %s3
  // Predicated region
  $region2: #{basic_conv_forward.1} parent=0 // pred_check
    _
  $region3: #{basic_conv_forward.1} parent=0 // pred_check_branch
    %8 = sbr.rel (0) target = $region5
  $region4: #{basic_conv_forward.1} parent=0 // pred_region
    _
  $region5: #{basic_conv_forward.1} parent=0 // pred_fallthru
    _
  // Predicated region
  $region6: #{basic_conv_forward.1} parent=0 // pred_check
    _
  $region7: #{basic_conv_forward.1} parent=0 // pred_check_branch
    %10 = sbr.rel (0) target = $region9
  $region8: #{basic_conv_forward.1} parent=0 // pred_region
    _
  $region9: #{basic_conv_forward.1} parent=0 // pred_fallthru
    _
  %v11 = vld [vmem:[%s1] sm:$0xff]
  %v12 = vld [vmem:[%s1 + $0x8] sm:$0xf]
  %v13 = vld [vmem:[%s0] sm:$0xff]
  %s14 = scalar_lea.vmem %s0, 8
  %v15 = vld [vmem:[%s14] sm:$0xff]
  %v18 = vcombine.high %v11, %v11
  %19 = vrot.lane.b32.xlu0 %v11, 127
  %v20 = vpop.permute.xlu0 %19
  %21 = vrot.lane.b32.xlu0 %v18, 127
  %v22 = vpop.permute.xlu0 %21
  %23 = vrot.lane.b32.xlu0 %v12, 127
  %v24 = vpop.permute.xlu0 %23
  %vm25 = vcmask 1039360
  %v26 = vsel %vm25, %v20, %v22
  %v27 = vsel %vm25, %v22, %v24
  %vm28 = vcmask 31744
  %v30 = vsel %vm28, %v15, 0
  %vm32 = vcmask 1043456
  %v33 = vsel %vm32, %v26, 0
  %v35 = vsel %vm32, %v27, 0
  %v37 = vsel %vm32, %v24, 0
  %39 = vmatprep.subr.mxu0 0.0
  %40 = vmatpush1.msra.mxu0 0.0
  %41 = vmatprep.subr.mxu0 0.0
  %42 = vmatpush1.msra.mxu0 0.0
  %43 = vmatprep.subr.mxu0 0.0
  %44 = vmatpush1.msra.mxu0 0.0
  %45 = vmatprep.subr.mxu0 0.0
  %46 = vmatpush1.msra.mxu0 0.0
  %47 = vmatprep.subr.mxu0 0.0
  %48 = vmatpush1.msra.mxu0 0.0
  %49 = vmatprep.subr.mxu0 0.0
  %50 = vmatpush1.msra.mxu0 0.0
  %51 = vmatprep.subr.mxu0 0.0
  %52 = vmatpush1.msra.mxu0 0.0
  %53 = vmatprep.subr.mxu0 0.0
  %54 = vmatpush1.msra.mxu0 0.0
  %55 = vmatprep.subr.mxu0 0.0
  %56 = vmatpush1.msra.mxu0 0.0
  %57 = vmatprep.subr.mxu0 0.0
  %58 = vmatpush1.msra.mxu0 0.0
  %59 = vmatprep.subr.mxu0 0.0
  %60 = vmatpush1.msra.mxu0 0.0
  %61 = vmatprep.subr.mxu0 0.0
  %62 = vmatpush1.msra.mxu0 0.0
  %63 = vmatprep.subr.mxu0 0.0
  %64 = vmatpush1.msra.mxu0 0.0
  %65 = vmatprep.subr.mxu0 0.0
  %66 = vmatpush1.msra.mxu0 0.0
  %67 = vmatprep.subr.mxu0 0.0
  %68 = vmatpush1.msra.mxu0 0.0
  %69 = vmatprep.subr.mxu0 %v35
  %70 = vmatpush1.msra.mxu0 %v33
  %71 = vmatprep.subr.mxu0 0.0
  %72 = vmatpush2.msra.mxu0 0.0
  %73 = vmatprep.subr.mxu0 0.0
  %74 = vmatpush2.msra.mxu0 0.0
  %75 = vmatprep.subr.mxu0 0.0
  %76 = vmatpush2.msra.mxu0 0.0
  %77 = vmatprep.subr.mxu0 0.0
  %78 = vmatpush2.msra.mxu0 0.0
  %79 = vmatprep.subr.mxu0 0.0
  %80 = vmatpush2.msra.mxu0 0.0
  %81 = vmatprep.subr.mxu0 0.0
  %82 = vmatpush2.msra.mxu0 0.0
  %83 = vmatprep.subr.mxu0 0.0
  %84 = vmatpush2.msra.mxu0 0.0
  %85 = vmatprep.subr.mxu0 0.0
  %86 = vmatpush2.msra.mxu0 0.0
  %87 = vmatprep.subr.mxu0 0.0
  %88 = vmatpush2.msra.mxu0 0.0
  %89 = vmatprep.subr.mxu0 0.0
  %90 = vmatpush2.msra.mxu0 0.0
  %91 = vmatprep.subr.mxu0 0.0
  %92 = vmatpush2.msra.mxu0 0.0
  %93 = vmatprep.subr.mxu0 0.0
  %94 = vmatpush2.msra.mxu0 0.0
  %95 = vmatprep.subr.mxu0 0.0
  %96 = vmatpush2.msra.mxu0 0.0
  %97 = vmatprep.subr.mxu0 0.0
  %98 = vmatpush2.msra.mxu0 0.0
  %99 = vmatprep.subr.mxu0 0.0
  %100 = vmatpush2.msra.mxu0 0.0
  %101 = vmatprep.subr.mxu0 0.0
  %102 = vmatpush2.msra.mxu0 0.0
  %103 = vmatprep.mubr.f32.mxu0 0.0
  %104 = vmatmul.mubr.f32.gmra.mxu0 %v30
  %v105 = vpop.f32.mrf.mxu0
  %v106 = vadd.f32 0.0, %v105
  %v107 = vpop.f32.mrf.mxu0
  %v108 = vadd.f32 0.0, %v107
  %109 = vdwg.mxu0
  %110 = vmatprep.subr.mxu0 0.0
  %111 = vmatpush1.msra.mxu0 0.0
  %112 = vmatprep.subr.mxu0 0.0
  %113 = vmatpush1.msra.mxu0 0.0
  %114 = vmatprep.subr.mxu0 0.0
  %115 = vmatpush1.msra.mxu0 0.0
  %116 = vmatprep.subr.mxu0 0.0
  %117 = vmatpush1.msra.mxu0 0.0
  %118 = vmatprep.subr.mxu0 0.0
  %119 = vmatpush1.msra.mxu0 0.0
  %120 = vmatprep.subr.mxu0 0.0
  %121 = vmatpush1.msra.mxu0 0.0
  %122 = vmatprep.subr.mxu0 0.0
  %123 = vmatpush1.msra.mxu0 0.0
  %124 = vmatprep.subr.mxu0 0.0
  %125 = vmatpush1.msra.mxu0 0.0
  %126 = vmatprep.subr.mxu0 0.0
  %127 = vmatpush1.msra.mxu0 0.0
  %128 = vmatprep.subr.mxu0 0.0
  %129 = vmatpush1.msra.mxu0 0.0
  %130 = vmatprep.subr.mxu0 0.0
  %131 = vmatpush1.msra.mxu0 0.0
  %132 = vmatprep.subr.mxu0 0.0
  %133 = vmatpush1.msra.mxu0 0.0
  %134 = vmatprep.subr.mxu0 0.0
  %135 = vmatpush1.msra.mxu0 0.0
  %136 = vmatprep.subr.mxu0 0.0
  %137 = vmatpush1.msra.mxu0 0.0
  %138 = vmatprep.subr.mxu0 0.0
  %139 = vmatpush1.msra.mxu0 0.0
  %140 = vmatprep.subr.mxu0 0.0
  %141 = vmatpush1.msra.mxu0 %v37
  %142 = vmatprep.subr.mxu0 0.0
  %143 = vmatpush2.msra.mxu0 0.0
  %144 = vmatprep.subr.mxu0 0.0
  %145 = vmatpush2.msra.mxu0 0.0
  %146 = vmatprep.subr.mxu0 0.0
  %147 = vmatpush2.msra.mxu0 0.0
  %148 = vmatprep.subr.mxu0 0.0
  %149 = vmatpush2.msra.mxu0 0.0
  %150 = vmatprep.subr.mxu0 0.0
  %151 = vmatpush2.msra.mxu0 0.0
  %152 = vmatprep.subr.mxu0 0.0
  %153 = vmatpush2.msra.mxu0 0.0
  %154 = vmatprep.subr.mxu0 0.0
  %155 = vmatpush2.msra.mxu0 0.0
  %156 = vmatprep.subr.mxu0 0.0
  %157 = vmatpush2.msra.mxu0 0.0
  %158 = vmatprep.subr.mxu0 0.0
  %159 = vmatpush2.msra.mxu0 0.0
  %160 = vmatprep.subr.mxu0 0.0
  %161 = vmatpush2.msra.mxu0 0.0
  %162 = vmatprep.subr.mxu0 0.0
  %163 = vmatpush2.msra.mxu0 0.0
  %164 = vmatprep.subr.mxu0 0.0
  %165 = vmatpush2.msra.mxu0 0.0
  %166 = vmatprep.subr.mxu0 0.0
  %167 = vmatpush2.msra.mxu0 0.0
  %168 = vmatprep.subr.mxu0 0.0
  %169 = vmatpush2.msra.mxu0 0.0
  %170 = vmatprep.subr.mxu0 0.0
  %171 = vmatpush2.msra.mxu0 0.0
  %172 = vmatprep.subr.mxu0 0.0
  %173 = vmatpush2.msra.mxu0 0.0
  %174 = vmatprep.mubr.f32.mxu0 0.0
  %175 = vmatmul.mubr.f32.gmra.mxu0 %v30
  %v176 = vpop.f32.mrf.mxu0
  %v177 = vadd.f32 0.0, %v176
  %v178 = vpop.f32.mrf.mxu0
  %179 = vdwg.mxu0
  %v181 = vsel %vm28, %v13, 0
  %v183 = vsel %vm32, %v11, 0
  %v185 = vsel %vm32, %v18, 0
  %v187 = vsel %vm32, %v12, 0
  %189 = vmatprep.subr.mxu0 0.0
  %190 = vmatpush1.msra.mxu0 0.0
  %191 = vmatprep.subr.mxu0 0.0
  %192 = vmatpush1.msra.mxu0 0.0
  %193 = vmatprep.subr.mxu0 0.0
  %194 = vmatpush1.msra.mxu0 0.0
  %195 = vmatprep.subr.mxu0 0.0
  %196 = vmatpush1.msra.mxu0 0.0
  %197 = vmatprep.subr.mxu0 0.0
  %198 = vmatpush1.msra.mxu0 0.0
  %199 = vmatprep.subr.mxu0 0.0
  %200 = vmatpush1.msra.mxu0 0.0
  %201 = vmatprep.subr.mxu0 0.0
  %202 = vmatpush1.msra.mxu0 0.0
  %203 = vmatprep.subr.mxu0 0.0
  %204 = vmatpush1.msra.mxu0 0.0
  %205 = vmatprep.subr.mxu0 0.0
  %206 = vmatpush1.msra.mxu0 0.0
  %207 = vmatprep.subr.mxu0 0.0
  %208 = vmatpush1.msra.mxu0 0.0
  %209 = vmatprep.subr.mxu0 0.0
  %210 = vmatpush1.msra.mxu0 0.0
  %211 = vmatprep.subr.mxu0 0.0
  %212 = vmatpush1.msra.mxu0 0.0
  %213 = vmatprep.subr.mxu0 0.0
  %214 = vmatpush1.msra.mxu0 0.0
  %215 = vmatprep.subr.mxu0 0.0
  %216 = vmatpush1.msra.mxu0 0.0
  %217 = vmatprep.subr.mxu0 0.0
  %218 = vmatpush1.msra.mxu0 0.0
  %219 = vmatprep.subr.mxu0 %v185
  %220 = vmatpush1.msra.mxu0 %v183
  %221 = vmatprep.subr.mxu0 0.0
  %222 = vmatpush2.msra.mxu0 0.0
  %223 = vmatprep.subr.mxu0 0.0
  %224 = vmatpush2.msra.mxu0 0.0
  %225 = vmatprep.subr.mxu0 0.0
  %226 = vmatpush2.msra.mxu0 0.0
  %227 = vmatprep.subr.mxu0 0.0
  %228 = vmatpush2.msra.mxu0 0.0
  %229 = vmatprep.subr.mxu0 0.0
  %230 = vmatpush2.msra.mxu0 0.0
  %231 = vmatprep.subr.mxu0 0.0
  %232 = vmatpush2.msra.mxu0 0.0
  %233 = vmatprep.subr.mxu0 0.0
  %234 = vmatpush2.msra.mxu0 0.0
  %235 = vmatprep.subr.mxu0 0.0
  %236 = vmatpush2.msra.mxu0 0.0
  %237 = vmatprep.subr.mxu0 0.0
  %238 = vmatpush2.msra.mxu0 0.0
  %239 = vmatprep.subr.mxu0 0.0
  %240 = vmatpush2.msra.mxu0 0.0
  %241 = vmatprep.subr.mxu0 0.0
  %242 = vmatpush2.msra.mxu0 0.0
  %243 = vmatprep.subr.mxu0 0.0
  %244 = vmatpush2.msra.mxu0 0.0
  %245 = vmatprep.subr.mxu0 0.0
  %246 = vmatpush2.msra.mxu0 0.0
  %247 = vmatprep.subr.mxu0 0.0
  %248 = vmatpush2.msra.mxu0 0.0
  %249 = vmatprep.subr.mxu0 0.0
  %250 = vmatpush2.msra.mxu0 0.0
  %251 = vmatprep.subr.mxu0 0.0
  %252 = vmatpush2.msra.mxu0 0.0
  %253 = vmatprep.mubr.f32.mxu0 0.0
  %254 = vmatmul.mubr.f32.gmra.mxu0 %v181
  %v255 = vpop.f32.mrf.mxu0
  %v256 = vadd.f32 %v106, %v255
  %v257 = vpop.f32.mrf.mxu0
  %v258 = vadd.f32 %v108, %v257
  %259 = vdwg.mxu0
  %260 = vmatprep.subr.mxu0 0.0
  %261 = vmatpush1.msra.mxu0 0.0
  %262 = vmatprep.subr.mxu0 0.0
  %263 = vmatpush1.msra.mxu0 0.0
  %264 = vmatprep.subr.mxu0 0.0
  %265 = vmatpush1.msra.mxu0 0.0
  %266 = vmatprep.subr.mxu0 0.0
  %267 = vmatpush1.msra.mxu0 0.0
  %268 = vmatprep.subr.mxu0 0.0
  %269 = vmatpush1.msra.mxu0 0.0
  %270 = vmatprep.subr.mxu0 0.0
  %271 = vmatpush1.msra.mxu0 0.0
  %272 = vmatprep.subr.mxu0 0.0
  %273 = vmatpush1.msra.mxu0 0.0
  %274 = vmatprep.subr.mxu0 0.0
  %275 = vmatpush1.msra.mxu0 0.0
  %276 = vmatprep.subr.mxu0 0.0
  %277 = vmatpush1.msra.mxu0 0.0
  %278 = vmatprep.subr.mxu0 0.0
  %279 = vmatpush1.msra.mxu0 0.0
  %280 = vmatprep.subr.mxu0 0.0
  %281 = vmatpush1.msra.mxu0 0.0
  %282 = vmatprep.subr.mxu0 0.0
  %283 = vmatpush1.msra.mxu0 0.0
  %284 = vmatprep.subr.mxu0 0.0
  %285 = vmatpush1.msra.mxu0 0.0
  %286 = vmatprep.subr.mxu0 0.0
  %287 = vmatpush1.msra.mxu0 0.0
  %288 = vmatprep.subr.mxu0 0.0
  %289 = vmatpush1.msra.mxu0 0.0
  %290 = vmatprep.subr.mxu0 0.0
  %291 = vmatpush1.msra.mxu0 %v187
  %292 = vmatprep.subr.mxu0 0.0
  %293 = vmatpush2.msra.mxu0 0.0
  %294 = vmatprep.subr.mxu0 0.0
  %295 = vmatpush2.msra.mxu0 0.0
  %296 = vmatprep.subr.mxu0 0.0
  %297 = vmatpush2.msra.mxu0 0.0
  %298 = vmatprep.subr.mxu0 0.0
  %299 = vmatpush2.msra.mxu0 0.0
  %300 = vmatprep.subr.mxu0 0.0
  %301 = vmatpush2.msra.mxu0 0.0
  %302 = vmatprep.subr.mxu0 0.0
  %303 = vmatpush2.msra.mxu0 0.0
  %304 = vmatprep.subr.mxu0 0.0
  %305 = vmatpush2.msra.mxu0 0.0
  %306 = vmatprep.subr.mxu0 0.0
  %307 = vmatpush2.msra.mxu0 0.0
  %308 = vmatprep.subr.mxu0 0.0
  %309 = vmatpush2.msra.mxu0 0.0
  %310 = vmatprep.subr.mxu0 0.0
  %311 = vmatpush2.msra.mxu0 0.0
  %312 = vmatprep.subr.mxu0 0.0
  %313 = vmatpush2.msra.mxu0 0.0
  %314 = vmatprep.subr.mxu0 0.0
  %315 = vmatpush2.msra.mxu0 0.0
  %316 = vmatprep.subr.mxu0 0.0
  %317 = vmatpush2.msra.mxu0 0.0
  %318 = vmatprep.subr.mxu0 0.0
  %319 = vmatpush2.msra.mxu0 0.0
  %320 = vmatprep.subr.mxu0 0.0
  %321 = vmatpush2.msra.mxu0 0.0
  %322 = vmatprep.subr.mxu0 0.0
  %323 = vmatpush2.msra.mxu0 0.0
  %324 = vmatprep.mubr.f32.mxu0 0.0
  %325 = vmatmul.mubr.f32.gmra.mxu0 %v181
  %v326 = vpop.f32.mrf.mxu0
  %v327 = vadd.f32 %v177, %v326
  %v328 = vpop.f32.mrf.mxu0
  %329 = vdwg.mxu0
  %s330 = scalar_lea.vmem %s0, 16
  %v331 = vld [vmem:[%s330] sm:$0xff]
  %332 = vrot.lane.b32.xlu0 %v11, 126
  %v333 = vpop.permute.xlu0 %332
  %334 = vrot.lane.b32.xlu0 %v18, 126
  %v335 = vpop.permute.xlu0 %334
  %336 = vrot.lane.b32.xlu0 %v12, 126
  %v337 = vpop.permute.xlu0 %336
  %vm338 = vcmask 1031168
  %v339 = vsel %vm338, %v333, %v335
  %v340 = vsel %vm338, %v335, %v337
  %v342 = vsel %vm28, %v331, 0
  %v344 = vsel %vm32, %v339, 0
  %v346 = vsel %vm32, %v340, 0
  %v348 = vsel %vm32, %v337, 0
  %350 = vmatprep.subr.mxu0 0.0
  %351 = vmatpush1.msra.mxu0 0.0
  %352 = vmatprep.subr.mxu0 0.0
  %353 = vmatpush1.msra.mxu0 0.0
  %354 = vmatprep.subr.mxu0 0.0
  %355 = vmatpush1.msra.mxu0 0.0
  %356 = vmatprep.subr.mxu0 0.0
  %357 = vmatpush1.msra.mxu0 0.0
  %358 = vmatprep.subr.mxu0 0.0
  %359 = vmatpush1.msra.mxu0 0.0
  %360 = vmatprep.subr.mxu0 0.0
  %361 = vmatpush1.msra.mxu0 0.0
  %362 = vmatprep.subr.mxu0 0.0
  %363 = vmatpush1.msra.mxu0 0.0
  %364 = vmatprep.subr.mxu0 0.0
  %365 = vmatpush1.msra.mxu0 0.0
  %366 = vmatprep.subr.mxu0 0.0
  %367 = vmatpush1.msra.mxu0 0.0
  %368 = vmatprep.subr.mxu0 0.0
  %369 = vmatpush1.msra.mxu0 0.0
  %370 = vmatprep.subr.mxu0 0.0
  %371 = vmatpush1.msra.mxu0 0.0
  %372 = vmatprep.subr.mxu0 0.0
  %373 = vmatpush1.msra.mxu0 0.0
  %374 = vmatprep.subr.mxu0 0.0
  %375 = vmatpush1.msra.mxu0 0.0
  %376 = vmatprep.subr.mxu0 0.0
  %377 = vmatpush1.msra.mxu0 0.0
  %378 = vmatprep.subr.mxu0 0.0
  %379 = vmatpush1.msra.mxu0 0.0
  %380 = vmatprep.subr.mxu0 %v346
  %381 = vmatpush1.msra.mxu0 %v344
  %382 = vmatprep.subr.mxu0 0.0
  %383 = vmatpush2.msra.mxu0 0.0
  %384 = vmatprep.subr.mxu0 0.0
  %385 = vmatpush2.msra.mxu0 0.0
  %386 = vmatprep.subr.mxu0 0.0
  %387 = vmatpush2.msra.mxu0 0.0
  %388 = vmatprep.subr.mxu0 0.0
  %389 = vmatpush2.msra.mxu0 0.0
  %390 = vmatprep.subr.mxu0 0.0
  %391 = vmatpush2.msra.mxu0 0.0
  %392 = vmatprep.subr.mxu0 0.0
  %393 = vmatpush2.msra.mxu0 0.0
  %394 = vmatprep.subr.mxu0 0.0
  %395 = vmatpush2.msra.mxu0 0.0
  %396 = vmatprep.subr.mxu0 0.0
  %397 = vmatpush2.msra.mxu0 0.0
  %398 = vmatprep.subr.mxu0 0.0
  %399 = vmatpush2.msra.mxu0 0.0
  %400 = vmatprep.subr.mxu0 0.0
  %401 = vmatpush2.msra.mxu0 0.0
  %402 = vmatprep.subr.mxu0 0.0
  %403 = vmatpush2.msra.mxu0 0.0
  %404 = vmatprep.subr.mxu0 0.0
  %405 = vmatpush2.msra.mxu0 0.0
  %406 = vmatprep.subr.mxu0 0.0
  %407 = vmatpush2.msra.mxu0 0.0
  %408 = vmatprep.subr.mxu0 0.0
  %409 = vmatpush2.msra.mxu0 0.0
  %410 = vmatprep.subr.mxu0 0.0
  %411 = vmatpush2.msra.mxu0 0.0
  %412 = vmatprep.subr.mxu0 0.0
  %413 = vmatpush2.msra.mxu0 0.0
  %414 = vmatprep.mubr.f32.mxu0 0.0
  %415 = vmatmul.mubr.f32.gmra.mxu0 %v342
  %v416 = vpop.f32.mrf.mxu0
  %v417 = vadd.f32 0.0, %v416
  %v418 = vpop.f32.mrf.mxu0
  %v419 = vadd.f32 0.0, %v418
  %420 = vdwg.mxu0
  %421 = vmatprep.subr.mxu0 0.0
  %422 = vmatpush1.msra.mxu0 0.0
  %423 = vmatprep.subr.mxu0 0.0
  %424 = vmatpush1.msra.mxu0 0.0
  %425 = vmatprep.subr.mxu0 0.0
  %426 = vmatpush1.msra.mxu0 0.0
  %427 = vmatprep.subr.mxu0 0.0
  %428 = vmatpush1.msra.mxu0 0.0
  %429 = vmatprep.subr.mxu0 0.0
  %430 = vmatpush1.msra.mxu0 0.0
  %431 = vmatprep.subr.mxu0 0.0
  %432 = vmatpush1.msra.mxu0 0.0
  %433 = vmatprep.subr.mxu0 0.0
  %434 = vmatpush1.msra.mxu0 0.0
  %435 = vmatprep.subr.mxu0 0.0
  %436 = vmatpush1.msra.mxu0 0.0
  %437 = vmatprep.subr.mxu0 0.0
  %438 = vmatpush1.msra.mxu0 0.0
  %439 = vmatprep.subr.mxu0 0.0
  %440 = vmatpush1.msra.mxu0 0.0
  %441 = vmatprep.subr.mxu0 0.0
  %442 = vmatpush1.msra.mxu0 0.0
  %443 = vmatprep.subr.mxu0 0.0
  %444 = vmatpush1.msra.mxu0 0.0
  %445 = vmatprep.subr.mxu0 0.0
  %446 = vmatpush1.msra.mxu0 0.0
  %447 = vmatprep.subr.mxu0 0.0
  %448 = vmatpush1.msra.mxu0 0.0
  %449 = vmatprep.subr.mxu0 0.0
  %450 = vmatpush1.msra.mxu0 0.0
  %451 = vmatprep.subr.mxu0 0.0
  %452 = vmatpush1.msra.mxu0 %v348
  %453 = vmatprep.subr.mxu0 0.0
  %454 = vmatpush2.msra.mxu0 0.0
  %455 = vmatprep.subr.mxu0 0.0
  %456 = vmatpush2.msra.mxu0 0.0
  %457 = vmatprep.subr.mxu0 0.0
  %458 = vmatpush2.msra.mxu0 0.0
  %459 = vmatprep.subr.mxu0 0.0
  %460 = vmatpush2.msra.mxu0 0.0
  %461 = vmatprep.subr.mxu0 0.0
  %462 = vmatpush2.msra.mxu0 0.0
  %463 = vmatprep.subr.mxu0 0.0
  %464 = vmatpush2.msra.mxu0 0.0
  %465 = vmatprep.subr.mxu0 0.0
  %466 = vmatpush2.msra.mxu0 0.0
  %467 = vmatprep.subr.mxu0 0.0
  %468 = vmatpush2.msra.mxu0 0.0
  %469 = vmatprep.subr.mxu0 0.0
  %470 = vmatpush2.msra.mxu0 0.0
  %471 = vmatprep.subr.mxu0 0.0
  %472 = vmatpush2.msra.mxu0 0.0
  %473 = vmatprep.subr.mxu0 0.0
  %474 = vmatpush2.msra.mxu0 0.0
  %475 = vmatprep.subr.mxu0 0.0
  %476 = vmatpush2.msra.mxu0 0.0
  %477 = vmatprep.subr.mxu0 0.0
  %478 = vmatpush2.msra.mxu0 0.0
  %479 = vmatprep.subr.mxu0 0.0
  %480 = vmatpush2.msra.mxu0 0.0
  %481 = vmatprep.subr.mxu0 0.0
  %482 = vmatpush2.msra.mxu0 0.0
  %483 = vmatprep.subr.mxu0 0.0
  %484 = vmatpush2.msra.mxu0 0.0
  %485 = vmatprep.mubr.f32.mxu0 0.0
  %486 = vmatmul.mubr.f32.gmra.mxu0 %v342
  %v487 = vpop.f32.mrf.mxu0
  %v488 = vadd.f32 0.0, %v487
  %v489 = vpop.f32.mrf.mxu0
  %490 = vdwg.mxu0
  %v491 = vadd.f32 %v256, %v417
  %v492 = vadd.f32 %v258, %v419
  %v493 = vadd.f32 %v327, %v488
  %s494 = scalar_lea.vmem %s0, 24
  %v495 = vld [vmem:[%s494] sm:$0xff]
  %496 = vrot.lane.b32.xlu0 %v11, 110
  %v497 = vpop.permute.xlu0 %496
  %498 = vrot.lane.b32.xlu0 %v18, 110
  %v499 = vpop.permute.xlu0 %498
  %500 = vrot.lane.b32.xlu0 %v12, 110
  %v501 = vpop.permute.xlu0 %500
  %vm502 = vcmask 900096
  %v503 = vsel %vm502, %v497, %v499
  %v504 = vsel %vm502, %v499, %v501
  %v506 = vsel %vm28, %v495, 0
  %v508 = vsel %vm32, %v503, 0
  %v510 = vsel %vm32, %v504, 0
  %v512 = vsel %vm32, %v501, 0
  %514 = vmatprep.subr.mxu0 0.0
  %515 = vmatpush1.msra.mxu0 0.0
  %516 = vmatprep.subr.mxu0 0.0
  %517 = vmatpush1.msra.mxu0 0.0
  %518 = vmatprep.subr.mxu0 0.0
  %519 = vmatpush1.msra.mxu0 0.0
  %520 = vmatprep.subr.mxu0 0.0
  %521 = vmatpush1.msra.mxu0 0.0
  %522 = vmatprep.subr.mxu0 0.0
  %523 = vmatpush1.msra.mxu0 0.0
  %524 = vmatprep.subr.mxu0 0.0
  %525 = vmatpush1.msra.mxu0 0.0
  %526 = vmatprep.subr.mxu0 0.0
  %527 = vmatpush1.msra.mxu0 0.0
  %528 = vmatprep.subr.mxu0 0.0
  %529 = vmatpush1.msra.mxu0 0.0
  %530 = vmatprep.subr.mxu0 0.0
  %531 = vmatpush1.msra.mxu0 0.0
  %532 = vmatprep.subr.mxu0 0.0
  %533 = vmatpush1.msra.mxu0 0.0
  %534 = vmatprep.subr.mxu0 0.0
  %535 = vmatpush1.msra.mxu0 0.0
  %536 = vmatprep.subr.mxu0 0.0
  %537 = vmatpush1.msra.mxu0 0.0
  %538 = vmatprep.subr.mxu0 0.0
  %539 = vmatpush1.msra.mxu0 0.0
  %540 = vmatprep.subr.mxu0 0.0
  %541 = vmatpush1.msra.mxu0 0.0
  %542 = vmatprep.subr.mxu0 0.0
  %543 = vmatpush1.msra.mxu0 0.0
  %544 = vmatprep.subr.mxu0 %v510
  %545 = vmatpush1.msra.mxu0 %v508
  %546 = vmatprep.subr.mxu0 0.0
  %547 = vmatpush2.msra.mxu0 0.0
  %548 = vmatprep.subr.mxu0 0.0
  %549 = vmatpush2.msra.mxu0 0.0
  %550 = vmatprep.subr.mxu0 0.0
  %551 = vmatpush2.msra.mxu0 0.0
  %552 = vmatprep.subr.mxu0 0.0
  %553 = vmatpush2.msra.mxu0 0.0
  %554 = vmatprep.subr.mxu0 0.0
  %555 = vmatpush2.msra.mxu0 0.0
  %556 = vmatprep.subr.mxu0 0.0
  %557 = vmatpush2.msra.mxu0 0.0
  %558 = vmatprep.subr.mxu0 0.0
  %559 = vmatpush2.msra.mxu0 0.0
  %560 = vmatprep.subr.mxu0 0.0
  %561 = vmatpush2.msra.mxu0 0.0
  %562 = vmatprep.subr.mxu0 0.0
  %563 = vmatpush2.msra.mxu0 0.0
  %564 = vmatprep.subr.mxu0 0.0
  %565 = vmatpush2.msra.mxu0 0.0
  %566 = vmatprep.subr.mxu0 0.0
  %567 = vmatpush2.msra.mxu0 0.0
  %568 = vmatprep.subr.mxu0 0.0
  %569 = vmatpush2.msra.mxu0 0.0
  %570 = vmatprep.subr.mxu0 0.0
  %571 = vmatpush2.msra.mxu0 0.0
  %572 = vmatprep.subr.mxu0 0.0
  %573 = vmatpush2.msra.mxu0 0.0
  %574 = vmatprep.subr.mxu0 0.0
  %575 = vmatpush2.msra.mxu0 0.0
  %576 = vmatprep.subr.mxu0 0.0
  %577 = vmatpush2.msra.mxu0 0.0
  %578 = vmatprep.mubr.f32.mxu0 0.0
  %579 = vmatmul.mubr.f32.gmra.mxu0 %v506
  %v580 = vpop.f32.mrf.mxu0
  %v581 = vadd.f32 0.0, %v580
  %v582 = vpop.f32.mrf.mxu0
  %v583 = vadd.f32 0.0, %v582
  %584 = vdwg.mxu0
  %585 = vmatprep.subr.mxu0 0.0
  %586 = vmatpush1.msra.mxu0 0.0
  %587 = vmatprep.subr.mxu0 0.0
  %588 = vmatpush1.msra.mxu0 0.0
  %589 = vmatprep.subr.mxu0 0.0
  %590 = vmatpush1.msra.mxu0 0.0
  %591 = vmatprep.subr.mxu0 0.0
  %592 = vmatpush1.msra.mxu0 0.0
  %593 = vmatprep.subr.mxu0 0.0
  %594 = vmatpush1.msra.mxu0 0.0
  %595 = vmatprep.subr.mxu0 0.0
  %596 = vmatpush1.msra.mxu0 0.0
  %597 = vmatprep.subr.mxu0 0.0
  %598 = vmatpush1.msra.mxu0 0.0
  %599 = vmatprep.subr.mxu0 0.0
  %600 = vmatpush1.msra.mxu0 0.0
  %601 = vmatprep.subr.mxu0 0.0
  %602 = vmatpush1.msra.mxu0 0.0
  %603 = vmatprep.subr.mxu0 0.0
  %604 = vmatpush1.msra.mxu0 0.0
  %605 = vmatprep.subr.mxu0 0.0
  %606 = vmatpush1.msra.mxu0 0.0
  %607 = vmatprep.subr.mxu0 0.0
  %608 = vmatpush1.msra.mxu0 0.0
  %609 = vmatprep.subr.mxu0 0.0
  %610 = vmatpush1.msra.mxu0 0.0
  %611 = vmatprep.subr.mxu0 0.0
  %612 = vmatpush1.msra.mxu0 0.0
  %613 = vmatprep.subr.mxu0 0.0
  %614 = vmatpush1.msra.mxu0 0.0
  %615 = vmatprep.subr.mxu0 0.0
  %616 = vmatpush1.msra.mxu0 %v512
  %617 = vmatprep.subr.mxu0 0.0
  %618 = vmatpush2.msra.mxu0 0.0
  %619 = vmatprep.subr.mxu0 0.0
  %620 = vmatpush2.msra.mxu0 0.0
  %621 = vmatprep.subr.mxu0 0.0
  %622 = vmatpush2.msra.mxu0 0.0
  %623 = vmatprep.subr.mxu0 0.0
  %624 = vmatpush2.msra.mxu0 0.0
  %625 = vmatprep.subr.mxu0 0.0
  %626 = vmatpush2.msra.mxu0 0.0
  %627 = vmatprep.subr.mxu0 0.0
  %628 = vmatpush2.msra.mxu0 0.0
  %629 = vmatprep.subr.mxu0 0.0
  %630 = vmatpush2.msra.mxu0 0.0
  %631 = vmatprep.subr.mxu0 0.0
  %632 = vmatpush2.msra.mxu0 0.0
  %633 = vmatprep.subr.mxu0 0.0
  %634 = vmatpush2.msra.mxu0 0.0
  %635 = vmatprep.subr.mxu0 0.0
  %636 = vmatpush2.msra.mxu0 0.0
  %637 = vmatprep.subr.mxu0 0.0
  %638 = vmatpush2.msra.mxu0 0.0
  %639 = vmatprep.subr.mxu0 0.0
  %640 = vmatpush2.msra.mxu0 0.0
  %641 = vmatprep.subr.mxu0 0.0
  %642 = vmatpush2.msra.mxu0 0.0
  %643 = vmatprep.subr.mxu0 0.0
  %644 = vmatpush2.msra.mxu0 0.0
  %645 = vmatprep.subr.mxu0 0.0
  %646 = vmatpush2.msra.mxu0 0.0
  %647 = vmatprep.subr.mxu0 0.0
  %648 = vmatpush2.msra.mxu0 0.0
  %649 = vmatprep.mubr.f32.mxu0 0.0
  %650 = vmatmul.mubr.f32.gmra.mxu0 %v506
  %v651 = vpop.f32.mrf.mxu0
  %v652 = vadd.f32 0.0, %v651
  %v653 = vpop.f32.mrf.mxu0
  %654 = vdwg.mxu0
  %v655 = vadd.f32 %v491, %v581
  %v656 = vadd.f32 %v492, %v583
  %v657 = vadd.f32 %v493, %v652
  %s658 = scalar_lea.vmem %s0, 32
  %v659 = vld [vmem:[%s658] sm:$0xff]
  %660 = vrot.lane.b32.xlu0 %v11, 109
  %v661 = vpop.permute.xlu0 %660
  %662 = vrot.lane.b32.xlu0 %v18, 109
  %v663 = vpop.permute.xlu0 %662
  %664 = vrot.lane.b32.xlu0 %v12, 109
  %v665 = vpop.permute.xlu0 %664
  %vm666 = vcmask 891904
  %v667 = vsel %vm666, %v661, %v663
  %v668 = vsel %vm666, %v663, %v665
  %v670 = vsel %vm28, %v659, 0
  %v672 = vsel %vm32, %v667, 0
  %v674 = vsel %vm32, %v668, 0
  %v676 = vsel %vm32, %v665, 0
  %678 = vmatprep.subr.mxu0 0.0
  %679 = vmatpush1.msra.mxu0 0.0
  %680 = vmatprep.subr.mxu0 0.0
  %681 = vmatpush1.msra.mxu0 0.0
  %682 = vmatprep.subr.mxu0 0.0
  %683 = vmatpush1.msra.mxu0 0.0
  %684 = vmatprep.subr.mxu0 0.0
  %685 = vmatpush1.msra.mxu0 0.0
  %686 = vmatprep.subr.mxu0 0.0
  %687 = vmatpush1.msra.mxu0 0.0
  %688 = vmatprep.subr.mxu0 0.0
  %689 = vmatpush1.msra.mxu0 0.0
  %690 = vmatprep.subr.mxu0 0.0
  %691 = vmatpush1.msra.mxu0 0.0
  %692 = vmatprep.subr.mxu0 0.0
  %693 = vmatpush1.msra.mxu0 0.0
  %694 = vmatprep.subr.mxu0 0.0
  %695 = vmatpush1.msra.mxu0 0.0
  %696 = vmatprep.subr.mxu0 0.0
  %697 = vmatpush1.msra.mxu0 0.0
  %698 = vmatprep.subr.mxu0 0.0
  %699 = vmatpush1.msra.mxu0 0.0
  %700 = vmatprep.subr.mxu0 0.0
  %701 = vmatpush1.msra.mxu0 0.0
  %702 = vmatprep.subr.mxu0 0.0
  %703 = vmatpush1.msra.mxu0 0.0
  %704 = vmatprep.subr.mxu0 0.0
  %705 = vmatpush1.msra.mxu0 0.0
  %706 = vmatprep.subr.mxu0 0.0
  %707 = vmatpush1.msra.mxu0 0.0
  %708 = vmatprep.subr.mxu0 %v674
  %709 = vmatpush1.msra.mxu0 %v672
  %710 = vmatprep.subr.mxu0 0.0
  %711 = vmatpush2.msra.mxu0 0.0
  %712 = vmatprep.subr.mxu0 0.0
  %713 = vmatpush2.msra.mxu0 0.0
  %714 = vmatprep.subr.mxu0 0.0
  %715 = vmatpush2.msra.mxu0 0.0
  %716 = vmatprep.subr.mxu0 0.0
  %717 = vmatpush2.msra.mxu0 0.0
  %718 = vmatprep.subr.mxu0 0.0
  %719 = vmatpush2.msra.mxu0 0.0
  %720 = vmatprep.subr.mxu0 0.0
  %721 = vmatpush2.msra.mxu0 0.0
  %722 = vmatprep.subr.mxu0 0.0
  %723 = vmatpush2.msra.mxu0 0.0
  %724 = vmatprep.subr.mxu0 0.0
  %725 = vmatpush2.msra.mxu0 0.0
  %726 = vmatprep.subr.mxu0 0.0
  %727 = vmatpush2.msra.mxu0 0.0
  %728 = vmatprep.subr.mxu0 0.0
  %729 = vmatpush2.msra.mxu0 0.0
  %730 = vmatprep.subr.mxu0 0.0
  %731 = vmatpush2.msra.mxu0 0.0
  %732 = vmatprep.subr.mxu0 0.0
  %733 = vmatpush2.msra.mxu0 0.0
  %734 = vmatprep.subr.mxu0 0.0
  %735 = vmatpush2.msra.mxu0 0.0
  %736 = vmatprep.subr.mxu0 0.0
  %737 = vmatpush2.msra.mxu0 0.0
  %738 = vmatprep.subr.mxu0 0.0
  %739 = vmatpush2.msra.mxu0 0.0
  %740 = vmatprep.subr.mxu0 0.0
  %741 = vmatpush2.msra.mxu0 0.0
  %742 = vmatprep.mubr.f32.mxu0 0.0
  %743 = vmatmul.mubr.f32.gmra.mxu0 %v670
  %v744 = vpop.f32.mrf.mxu0
  %v745 = vadd.f32 0.0, %v744
  %v746 = vpop.f32.mrf.mxu0
  %v747 = vadd.f32 0.0, %v746
  %748 = vdwg.mxu0
  %749 = vmatprep.subr.mxu0 0.0
  %750 = vmatpush1.msra.mxu0 0.0
  %751 = vmatprep.subr.mxu0 0.0
  %752 = vmatpush1.msra.mxu0 0.0
  %753 = vmatprep.subr.mxu0 0.0
  %754 = vmatpush1.msra.mxu0 0.0
  %755 = vmatprep.subr.mxu0 0.0
  %756 = vmatpush1.msra.mxu0 0.0
  %757 = vmatprep.subr.mxu0 0.0
  %758 = vmatpush1.msra.mxu0 0.0
  %759 = vmatprep.subr.mxu0 0.0
  %760 = vmatpush1.msra.mxu0 0.0
  %761 = vmatprep.subr.mxu0 0.0
  %762 = vmatpush1.msra.mxu0 0.0
  %763 = vmatprep.subr.mxu0 0.0
  %764 = vmatpush1.msra.mxu0 0.0
  %765 = vmatprep.subr.mxu0 0.0
  %766 = vmatpush1.msra.mxu0 0.0
  %767 = vmatprep.subr.mxu0 0.0
  %768 = vmatpush1.msra.mxu0 0.0
  %769 = vmatprep.subr.mxu0 0.0
  %770 = vmatpush1.msra.mxu0 0.0
  %771 = vmatprep.subr.mxu0 0.0
  %772 = vmatpush1.msra.mxu0 0.0
  %773 = vmatprep.subr.mxu0 0.0
  %774 = vmatpush1.msra.mxu0 0.0
  %775 = vmatprep.subr.mxu0 0.0
  %776 = vmatpush1.msra.mxu0 0.0
  %777 = vmatprep.subr.mxu0 0.0
  %778 = vmatpush1.msra.mxu0 0.0
  %779 = vmatprep.subr.mxu0 0.0
  %780 = vmatpush1.msra.mxu0 %v676
  %781 = vmatprep.subr.mxu0 0.0
  %782 = vmatpush2.msra.mxu0 0.0
  %783 = vmatprep.subr.mxu0 0.0
  %784 = vmatpush2.msra.mxu0 0.0
  %785 = vmatprep.subr.mxu0 0.0
  %786 = vmatpush2.msra.mxu0 0.0
  %787 = vmatprep.subr.mxu0 0.0
  %788 = vmatpush2.msra.mxu0 0.0
  %789 = vmatprep.subr.mxu0 0.0
  %790 = vmatpush2.msra.mxu0 0.0
  %791 = vmatprep.subr.mxu0 0.0
  %792 = vmatpush2.msra.mxu0 0.0
  %793 = vmatprep.subr.mxu0 0.0
  %794 = vmatpush2.msra.mxu0 0.0
  %795 = vmatprep.subr.mxu0 0.0
  %796 = vmatpush2.msra.mxu0 0.0
  %797 = vmatprep.subr.mxu0 0.0
  %798 = vmatpush2.msra.mxu0 0.0
  %799 = vmatprep.subr.mxu0 0.0
  %800 = vmatpush2.msra.mxu0 0.0
  %801 = vmatprep.subr.mxu0 0.0
  %802 = vmatpush2.msra.mxu0 0.0
  %803 = vmatprep.subr.mxu0 0.0
  %804 = vmatpush2.msra.mxu0 0.0
  %805 = vmatprep.subr.mxu0 0.0
  %806 = vmatpush2.msra.mxu0 0.0
  %807 = vmatprep.subr.mxu0 0.0
  %808 = vmatpush2.msra.mxu0 0.0
  %809 = vmatprep.subr.mxu0 0.0
  %810 = vmatpush2.msra.mxu0 0.0
  %811 = vmatprep.subr.mxu0 0.0
  %812 = vmatpush2.msra.mxu0 0.0
  %813 = vmatprep.mubr.f32.mxu0 0.0
  %814 = vmatmul.mubr.f32.gmra.mxu0 %v670
  %v815 = vpop.f32.mrf.mxu0
  %v816 = vadd.f32 0.0, %v815
  %v817 = vpop.f32.mrf.mxu0
  %818 = vdwg.mxu0
  %v819 = vadd.f32 %v655, %v745
  %v820 = vadd.f32 %v656, %v747
  %v821 = vadd.f32 %v657, %v816
  %s822 = scalar_lea.vmem %s0, 40
  %v823 = vld [vmem:[%s822] sm:$0xff]
  %824 = vrot.lane.b32.xlu0 %v11, 108
  %v825 = vpop.permute.xlu0 %824
  %826 = vrot.lane.b32.xlu0 %v18, 108
  %v827 = vpop.permute.xlu0 %826
  %828 = vrot.lane.b32.xlu0 %v12, 108
  %v829 = vpop.permute.xlu0 %828
  %vm830 = vcmask 883712
  %v831 = vsel %vm830, %v825, %v827
  %v832 = vsel %vm830, %v827, %v829
  %v834 = vsel %vm28, %v823, 0
  %v836 = vsel %vm32, %v831, 0
  %v838 = vsel %vm32, %v832, 0
  %v840 = vsel %vm32, %v829, 0
  %842 = vmatprep.subr.mxu0 0.0
  %843 = vmatpush1.msra.mxu0 0.0
  %844 = vmatprep.subr.mxu0 0.0
  %845 = vmatpush1.msra.mxu0 0.0
  %846 = vmatprep.subr.mxu0 0.0
  %847 = vmatpush1.msra.mxu0 0.0
  %848 = vmatprep.subr.mxu0 0.0
  %849 = vmatpush1.msra.mxu0 0.0
  %850 = vmatprep.subr.mxu0 0.0
  %851 = vmatpush1.msra.mxu0 0.0
  %852 = vmatprep.subr.mxu0 0.0
  %853 = vmatpush1.msra.mxu0 0.0
  %854 = vmatprep.subr.mxu0 0.0
  %855 = vmatpush1.msra.mxu0 0.0
  %856 = vmatprep.subr.mxu0 0.0
  %857 = vmatpush1.msra.mxu0 0.0
  %858 = vmatprep.subr.mxu0 0.0
  %859 = vmatpush1.msra.mxu0 0.0
  %860 = vmatprep.subr.mxu0 0.0
  %861 = vmatpush1.msra.mxu0 0.0
  %862 = vmatprep.subr.mxu0 0.0
  %863 = vmatpush1.msra.mxu0 0.0
  %864 = vmatprep.subr.mxu0 0.0
  %865 = vmatpush1.msra.mxu0 0.0
  %866 = vmatprep.subr.mxu0 0.0
  %867 = vmatpush1.msra.mxu0 0.0
  %868 = vmatprep.subr.mxu0 0.0
  %869 = vmatpush1.msra.mxu0 0.0
  %870 = vmatprep.subr.mxu0 0.0
  %871 = vmatpush1.msra.mxu0 0.0
  %872 = vmatprep.subr.mxu0 %v838
  %873 = vmatpush1.msra.mxu0 %v836
  %874 = vmatprep.subr.mxu0 0.0
  %875 = vmatpush2.msra.mxu0 0.0
  %876 = vmatprep.subr.mxu0 0.0
  %877 = vmatpush2.msra.mxu0 0.0
  %878 = vmatprep.subr.mxu0 0.0
  %879 = vmatpush2.msra.mxu0 0.0
  %880 = vmatprep.subr.mxu0 0.0
  %881 = vmatpush2.msra.mxu0 0.0
  %882 = vmatprep.subr.mxu0 0.0
  %883 = vmatpush2.msra.mxu0 0.0
  %884 = vmatprep.subr.mxu0 0.0
  %885 = vmatpush2.msra.mxu0 0.0
  %886 = vmatprep.subr.mxu0 0.0
  %887 = vmatpush2.msra.mxu0 0.0
  %888 = vmatprep.subr.mxu0 0.0
  %889 = vmatpush2.msra.mxu0 0.0
  %890 = vmatprep.subr.mxu0 0.0
  %891 = vmatpush2.msra.mxu0 0.0
  %892 = vmatprep.subr.mxu0 0.0
  %893 = vmatpush2.msra.mxu0 0.0
  %894 = vmatprep.subr.mxu0 0.0
  %895 = vmatpush2.msra.mxu0 0.0
  %896 = vmatprep.subr.mxu0 0.0
  %897 = vmatpush2.msra.mxu0 0.0
  %898 = vmatprep.subr.mxu0 0.0
  %899 = vmatpush2.msra.mxu0 0.0
  %900 = vmatprep.subr.mxu0 0.0
  %901 = vmatpush2.msra.mxu0 0.0
  %902 = vmatprep.subr.mxu0 0.0
  %903 = vmatpush2.msra.mxu0 0.0
  %904 = vmatprep.subr.mxu0 0.0
  %905 = vmatpush2.msra.mxu0 0.0
  %906 = vmatprep.mubr.f32.mxu0 0.0
  %907 = vmatmul.mubr.f32.gmra.mxu0 %v834
  %v908 = vpop.f32.mrf.mxu0
  %v909 = vadd.f32 0.0, %v908
  %v910 = vpop.f32.mrf.mxu0
  %v911 = vadd.f32 0.0, %v910
  %912 = vdwg.mxu0
  %913 = vmatprep.subr.mxu0 0.0
  %914 = vmatpush1.msra.mxu0 0.0
  %915 = vmatprep.subr.mxu0 0.0
  %916 = vmatpush1.msra.mxu0 0.0
  %917 = vmatprep.subr.mxu0 0.0
  %918 = vmatpush1.msra.mxu0 0.0
  %919 = vmatprep.subr.mxu0 0.0
  %920 = vmatpush1.msra.mxu0 0.0
  %921 = vmatprep.subr.mxu0 0.0
  %922 = vmatpush1.msra.mxu0 0.0
  %923 = vmatprep.subr.mxu0 0.0
  %924 = vmatpush1.msra.mxu0 0.0
  %925 = vmatprep.subr.mxu0 0.0
  %926 = vmatpush1.msra.mxu0 0.0
  %927 = vmatprep.subr.mxu0 0.0
  %928 = vmatpush1.msra.mxu0 0.0
  %929 = vmatprep.subr.mxu0 0.0
  %930 = vmatpush1.msra.mxu0 0.0
  %931 = vmatprep.subr.mxu0 0.0
  %932 = vmatpush1.msra.mxu0 0.0
  %933 = vmatprep.subr.mxu0 0.0
  %934 = vmatpush1.msra.mxu0 0.0
  %935 = vmatprep.subr.mxu0 0.0
  %936 = vmatpush1.msra.mxu0 0.0
  %937 = vmatprep.subr.mxu0 0.0
  %938 = vmatpush1.msra.mxu0 0.0
  %939 = vmatprep.subr.mxu0 0.0
  %940 = vmatpush1.msra.mxu0 0.0
  %941 = vmatprep.subr.mxu0 0.0
  %942 = vmatpush1.msra.mxu0 0.0
  %943 = vmatprep.subr.mxu0 0.0
  %944 = vmatpush1.msra.mxu0 %v840
  %945 = vmatprep.subr.mxu0 0.0
  %946 = vmatpush2.msra.mxu0 0.0
  %947 = vmatprep.subr.mxu0 0.0
  %948 = vmatpush2.msra.mxu0 0.0
  %949 = vmatprep.subr.mxu0 0.0
  %950 = vmatpush2.msra.mxu0 0.0
  %951 = vmatprep.subr.mxu0 0.0
  %952 = vmatpush2.msra.mxu0 0.0
  %953 = vmatprep.subr.mxu0 0.0
  %954 = vmatpush2.msra.mxu0 0.0
  %955 = vmatprep.subr.mxu0 0.0
  %956 = vmatpush2.msra.mxu0 0.0
  %957 = vmatprep.subr.mxu0 0.0
  %958 = vmatpush2.msra.mxu0 0.0
  %959 = vmatprep.subr.mxu0 0.0
  %960 = vmatpush2.msra.mxu0 0.0
  %961 = vmatprep.subr.mxu0 0.0
  %962 = vmatpush2.msra.mxu0 0.0
  %963 = vmatprep.subr.mxu0 0.0
  %964 = vmatpush2.msra.mxu0 0.0
  %965 = vmatprep.subr.mxu0 0.0
  %966 = vmatpush2.msra.mxu0 0.0
  %967 = vmatprep.subr.mxu0 0.0
  %968 = vmatpush2.msra.mxu0 0.0
  %969 = vmatprep.subr.mxu0 0.0
  %970 = vmatpush2.msra.mxu0 0.0
  %971 = vmatprep.subr.mxu0 0.0
  %972 = vmatpush2.msra.mxu0 0.0
  %973 = vmatprep.subr.mxu0 0.0
  %974 = vmatpush2.msra.mxu0 0.0
  %975 = vmatprep.subr.mxu0 0.0
  %976 = vmatpush2.msra.mxu0 0.0
  %977 = vmatprep.mubr.f32.mxu0 0.0
  %978 = vmatmul.mubr.f32.gmra.mxu0 %v834
  %v979 = vpop.f32.mrf.mxu0
  %v980 = vadd.f32 0.0, %v979
  %v981 = vpop.f32.mrf.mxu0
  %982 = vdwg.mxu0
  %v983 = vadd.f32 %v819, %v909
  %v984 = vadd.f32 %v820, %v911
  %v985 = vadd.f32 %v821, %v980
  %s986 = scalar_lea.vmem %s0, 48
  %v987 = vld [vmem:[%s986] sm:$0xff]
  %988 = vrot.lane.b32.xlu0 %v11, 92
  %v989 = vpop.permute.xlu0 %988
  %990 = vrot.lane.b32.xlu0 %v18, 92
  %v991 = vpop.permute.xlu0 %990
  %992 = vrot.lane.b32.xlu0 %v12, 92
  %v993 = vpop.permute.xlu0 %992
  %vm994 = vcmask 752640
  %v995 = vsel %vm994, %v989, %v991
  %v996 = vsel %vm994, %v991, %v993
  %v998 = vsel %vm28, %v987, 0
  %v1000 = vsel %vm32, %v995, 0
  %v1002 = vsel %vm32, %v996, 0
  %v1004 = vsel %vm32, %v993, 0
  %1006 = vmatprep.subr.mxu0 0.0
  %1007 = vmatpush1.msra.mxu0 0.0
  %1008 = vmatprep.subr.mxu0 0.0
  %1009 = vmatpush1.msra.mxu0 0.0
  %1010 = vmatprep.subr.mxu0 0.0
  %1011 = vmatpush1.msra.mxu0 0.0
  %1012 = vmatprep.subr.mxu0 0.0
  %1013 = vmatpush1.msra.mxu0 0.0
  %1014 = vmatprep.subr.mxu0 0.0
  %1015 = vmatpush1.msra.mxu0 0.0
  %1016 = vmatprep.subr.mxu0 0.0
  %1017 = vmatpush1.msra.mxu0 0.0
  %1018 = vmatprep.subr.mxu0 0.0
  %1019 = vmatpush1.msra.mxu0 0.0
  %1020 = vmatprep.subr.mxu0 0.0
  %1021 = vmatpush1.msra.mxu0 0.0
  %1022 = vmatprep.subr.mxu0 0.0
  %1023 = vmatpush1.msra.mxu0 0.0
  %1024 = vmatprep.subr.mxu0 0.0
  %1025 = vmatpush1.msra.mxu0 0.0
  %1026 = vmatprep.subr.mxu0 0.0
  %1027 = vmatpush1.msra.mxu0 0.0
  %1028 = vmatprep.subr.mxu0 0.0
  %1029 = vmatpush1.msra.mxu0 0.0
  %1030 = vmatprep.subr.mxu0 0.0
  %1031 = vmatpush1.msra.mxu0 0.0
  %1032 = vmatprep.subr.mxu0 0.0
  %1033 = vmatpush1.msra.mxu0 0.0
  %1034 = vmatprep.subr.mxu0 0.0
  %1035 = vmatpush1.msra.mxu0 0.0
  %1036 = vmatprep.subr.mxu0 %v1002
  %1037 = vmatpush1.msra.mxu0 %v1000
  %1038 = vmatprep.subr.mxu0 0.0
  %1039 = vmatpush2.msra.mxu0 0.0
  %1040 = vmatprep.subr.mxu0 0.0
  %1041 = vmatpush2.msra.mxu0 0.0
  %1042 = vmatprep.subr.mxu0 0.0
  %1043 = vmatpush2.msra.mxu0 0.0
  %1044 = vmatprep.subr.mxu0 0.0
  %1045 = vmatpush2.msra.mxu0 0.0
  %1046 = vmatprep.subr.mxu0 0.0
  %1047 = vmatpush2.msra.mxu0 0.0
  %1048 = vmatprep.subr.mxu0 0.0
  %1049 = vmatpush2.msra.mxu0 0.0
  %1050 = vmatprep.subr.mxu0 0.0
  %1051 = vmatpush2.msra.mxu0 0.0
  %1052 = vmatprep.subr.mxu0 0.0
  %1053 = vmatpush2.msra.mxu0 0.0
  %1054 = vmatprep.subr.mxu0 0.0
  %1055 = vmatpush2.msra.mxu0 0.0
  %1056 = vmatprep.subr.mxu0 0.0
  %1057 = vmatpush2.msra.mxu0 0.0
  %1058 = vmatprep.subr.mxu0 0.0
  %1059 = vmatpush2.msra.mxu0 0.0
  %1060 = vmatprep.subr.mxu0 0.0
  %1061 = vmatpush2.msra.mxu0 0.0
  %1062 = vmatprep.subr.mxu0 0.0
  %1063 = vmatpush2.msra.mxu0 0.0
  %1064 = vmatprep.subr.mxu0 0.0
  %1065 = vmatpush2.msra.mxu0 0.0
  %1066 = vmatprep.subr.mxu0 0.0
  %1067 = vmatpush2.msra.mxu0 0.0
  %1068 = vmatprep.subr.mxu0 0.0
  %1069 = vmatpush2.msra.mxu0 0.0
  %1070 = vmatprep.mubr.f32.mxu0 0.0
  %1071 = vmatmul.mubr.f32.gmra.mxu0 %v998
  %v1072 = vpop.f32.mrf.mxu0
  %v1073 = vadd.f32 0.0, %v1072
  %v1074 = vpop.f32.mrf.mxu0
  %v1075 = vadd.f32 0.0, %v1074
  %1076 = vdwg.mxu0
  %1077 = vmatprep.subr.mxu0 0.0
  %1078 = vmatpush1.msra.mxu0 0.0
  %1079 = vmatprep.subr.mxu0 0.0
  %1080 = vmatpush1.msra.mxu0 0.0
  %1081 = vmatprep.subr.mxu0 0.0
  %1082 = vmatpush1.msra.mxu0 0.0
  %1083 = vmatprep.subr.mxu0 0.0
  %1084 = vmatpush1.msra.mxu0 0.0
  %1085 = vmatprep.subr.mxu0 0.0
  %1086 = vmatpush1.msra.mxu0 0.0
  %1087 = vmatprep.subr.mxu0 0.0
  %1088 = vmatpush1.msra.mxu0 0.0
  %1089 = vmatprep.subr.mxu0 0.0
  %1090 = vmatpush1.msra.mxu0 0.0
  %1091 = vmatprep.subr.mxu0 0.0
  %1092 = vmatpush1.msra.mxu0 0.0
  %1093 = vmatprep.subr.mxu0 0.0
  %1094 = vmatpush1.msra.mxu0 0.0
  %1095 = vmatprep.subr.mxu0 0.0
  %1096 = vmatpush1.msra.mxu0 0.0
  %1097 = vmatprep.subr.mxu0 0.0
  %1098 = vmatpush1.msra.mxu0 0.0
  %1099 = vmatprep.subr.mxu0 0.0
  %1100 = vmatpush1.msra.mxu0 0.0
  %1101 = vmatprep.subr.mxu0 0.0
  %1102 = vmatpush1.msra.mxu0 0.0
  %1103 = vmatprep.subr.mxu0 0.0
  %1104 = vmatpush1.msra.mxu0 0.0
  %1105 = vmatprep.subr.mxu0 0.0
  %1106 = vmatpush1.msra.mxu0 0.0
  %1107 = vmatprep.subr.mxu0 0.0
  %1108 = vmatpush1.msra.mxu0 %v1004
  %1109 = vmatprep.subr.mxu0 0.0
  %1110 = vmatpush2.msra.mxu0 0.0
  %1111 = vmatprep.subr.mxu0 0.0
  %1112 = vmatpush2.msra.mxu0 0.0
  %1113 = vmatprep.subr.mxu0 0.0
  %1114 = vmatpush2.msra.mxu0 0.0
  %1115 = vmatprep.subr.mxu0 0.0
  %1116 = vmatpush2.msra.mxu0 0.0
  %1117 = vmatprep.subr.mxu0 0.0
  %1118 = vmatpush2.msra.mxu0 0.0
  %1119 = vmatprep.subr.mxu0 0.0
  %1120 = vmatpush2.msra.mxu0 0.0
  %1121 = vmatprep.subr.mxu0 0.0
  %1122 = vmatpush2.msra.mxu0 0.0
  %1123 = vmatprep.subr.mxu0 0.0
  %1124 = vmatpush2.msra.mxu0 0.0
  %1125 = vmatprep.subr.mxu0 0.0
  %1126 = vmatpush2.msra.mxu0 0.0
  %1127 = vmatprep.subr.mxu0 0.0
  %1128 = vmatpush2.msra.mxu0 0.0
  %1129 = vmatprep.subr.mxu0 0.0
  %1130 = vmatpush2.msra.mxu0 0.0
  %1131 = vmatprep.subr.mxu0 0.0
  %1132 = vmatpush2.msra.mxu0 0.0
  %1133 = vmatprep.subr.mxu0 0.0
  %1134 = vmatpush2.msra.mxu0 0.0
  %1135 = vmatprep.subr.mxu0 0.0
  %1136 = vmatpush2.msra.mxu0 0.0
  %1137 = vmatprep.subr.mxu0 0.0
  %1138 = vmatpush2.msra.mxu0 0.0
  %1139 = vmatprep.subr.mxu0 0.0
  %1140 = vmatpush2.msra.mxu0 0.0
  %1141 = vmatprep.mubr.f32.mxu0 0.0
  %1142 = vmatmul.mubr.f32.gmra.mxu0 %v998
  %v1143 = vpop.f32.mrf.mxu0
  %v1144 = vadd.f32 0.0, %v1143
  %v1145 = vpop.f32.mrf.mxu0
  %1146 = vdwg.mxu0
  %v1147 = vadd.f32 %v983, %v1073
  %v1148 = vadd.f32 %v984, %v1075
  %v1149 = vadd.f32 %v985, %v1144
  %s1150 = scalar_lea.vmem %s0, 56
  %v1151 = vld [vmem:[%s1150] sm:$0xff]
  %1152 = vrot.lane.b32.xlu0 %v11, 91
  %v1153 = vpop.permute.xlu0 %1152
  %1154 = vrot.lane.b32.xlu0 %v18, 91
  %v1155 = vpop.permute.xlu0 %1154
  %1156 = vrot.lane.b32.xlu0 %v12, 91
  %v1157 = vpop.permute.xlu0 %1156
  %vm1158 = vcmask 744448
  %v1159 = vsel %vm1158, %v1153, %v1155
  %v1160 = vsel %vm1158, %v1155, %v1157
  %v1162 = vsel %vm28, %v1151, 0
  %v1164 = vsel %vm32, %v1159, 0
  %v1166 = vsel %vm32, %v1160, 0
  %v1168 = vsel %vm32, %v1157, 0
  %1170 = vmatprep.subr.mxu0 0.0
  %1171 = vmatpush1.msra.mxu0 0.0
  %1172 = vmatprep.subr.mxu0 0.0
  %1173 = vmatpush1.msra.mxu0 0.0
  %1174 = vmatprep.subr.mxu0 0.0
  %1175 = vmatpush1.msra.mxu0 0.0
  %1176 = vmatprep.subr.mxu0 0.0
  %1177 = vmatpush1.msra.mxu0 0.0
  %1178 = vmatprep.subr.mxu0 0.0
  %1179 = vmatpush1.msra.mxu0 0.0
  %1180 = vmatprep.subr.mxu0 0.0
  %1181 = vmatpush1.msra.mxu0 0.0
  %1182 = vmatprep.subr.mxu0 0.0
  %1183 = vmatpush1.msra.mxu0 0.0
  %1184 = vmatprep.subr.mxu0 0.0
  %1185 = vmatpush1.msra.mxu0 0.0
  %1186 = vmatprep.subr.mxu0 0.0
  %1187 = vmatpush1.msra.mxu0 0.0
  %1188 = vmatprep.subr.mxu0 0.0
  %1189 = vmatpush1.msra.mxu0 0.0
  %1190 = vmatprep.subr.mxu0 0.0
  %1191 = vmatpush1.msra.mxu0 0.0
  %1192 = vmatprep.subr.mxu0 0.0
  %1193 = vmatpush1.msra.mxu0 0.0
  %1194 = vmatprep.subr.mxu0 0.0
  %1195 = vmatpush1.msra.mxu0 0.0
  %1196 = vmatprep.subr.mxu0 0.0
  %1197 = vmatpush1.msra.mxu0 0.0
  %1198 = vmatprep.subr.mxu0 0.0
  %1199 = vmatpush1.msra.mxu0 0.0
  %1200 = vmatprep.subr.mxu0 %v1166
  %1201 = vmatpush1.msra.mxu0 %v1164
  %1202 = vmatprep.subr.mxu0 0.0
  %1203 = vmatpush2.msra.mxu0 0.0
  %1204 = vmatprep.subr.mxu0 0.0
  %1205 = vmatpush2.msra.mxu0 0.0
  %1206 = vmatprep.subr.mxu0 0.0
  %1207 = vmatpush2.msra.mxu0 0.0
  %1208 = vmatprep.subr.mxu0 0.0
  %1209 = vmatpush2.msra.mxu0 0.0
  %1210 = vmatprep.subr.mxu0 0.0
  %1211 = vmatpush2.msra.mxu0 0.0
  %1212 = vmatprep.subr.mxu0 0.0
  %1213 = vmatpush2.msra.mxu0 0.0
  %1214 = vmatprep.subr.mxu0 0.0
  %1215 = vmatpush2.msra.mxu0 0.0
  %1216 = vmatprep.subr.mxu0 0.0
  %1217 = vmatpush2.msra.mxu0 0.0
  %1218 = vmatprep.subr.mxu0 0.0
  %1219 = vmatpush2.msra.mxu0 0.0
  %1220 = vmatprep.subr.mxu0 0.0
  %1221 = vmatpush2.msra.mxu0 0.0
  %1222 = vmatprep.subr.mxu0 0.0
  %1223 = vmatpush2.msra.mxu0 0.0
  %1224 = vmatprep.subr.mxu0 0.0
  %1225 = vmatpush2.msra.mxu0 0.0
  %1226 = vmatprep.subr.mxu0 0.0
  %1227 = vmatpush2.msra.mxu0 0.0
  %1228 = vmatprep.subr.mxu0 0.0
  %1229 = vmatpush2.msra.mxu0 0.0
  %1230 = vmatprep.subr.mxu0 0.0
  %1231 = vmatpush2.msra.mxu0 0.0
  %1232 = vmatprep.subr.mxu0 0.0
  %1233 = vmatpush2.msra.mxu0 0.0
  %1234 = vmatprep.mubr.f32.mxu0 0.0
  %1235 = vmatmul.mubr.f32.gmra.mxu0 %v1162
  %v1236 = vpop.f32.mrf.mxu0
  %v1237 = vadd.f32 0.0, %v1236
  %v1238 = vpop.f32.mrf.mxu0
  %v1239 = vadd.f32 0.0, %v1238
  %1240 = vdwg.mxu0
  %1241 = vmatprep.subr.mxu0 0.0
  %1242 = vmatpush1.msra.mxu0 0.0
  %1243 = vmatprep.subr.mxu0 0.0
  %1244 = vmatpush1.msra.mxu0 0.0
  %1245 = vmatprep.subr.mxu0 0.0
  %1246 = vmatpush1.msra.mxu0 0.0
  %1247 = vmatprep.subr.mxu0 0.0
  %1248 = vmatpush1.msra.mxu0 0.0
  %1249 = vmatprep.subr.mxu0 0.0
  %1250 = vmatpush1.msra.mxu0 0.0
  %1251 = vmatprep.subr.mxu0 0.0
  %1252 = vmatpush1.msra.mxu0 0.0
  %1253 = vmatprep.subr.mxu0 0.0
  %1254 = vmatpush1.msra.mxu0 0.0
  %1255 = vmatprep.subr.mxu0 0.0
  %1256 = vmatpush1.msra.mxu0 0.0
  %1257 = vmatprep.subr.mxu0 0.0
  %1258 = vmatpush1.msra.mxu0 0.0
  %1259 = vmatprep.subr.mxu0 0.0
  %1260 = vmatpush1.msra.mxu0 0.0
  %1261 = vmatprep.subr.mxu0 0.0
  %1262 = vmatpush1.msra.mxu0 0.0
  %1263 = vmatprep.subr.mxu0 0.0
  %1264 = vmatpush1.msra.mxu0 0.0
  %1265 = vmatprep.subr.mxu0 0.0
  %1266 = vmatpush1.msra.mxu0 0.0
  %1267 = vmatprep.subr.mxu0 0.0
  %1268 = vmatpush1.msra.mxu0 0.0
  %1269 = vmatprep.subr.mxu0 0.0
  %1270 = vmatpush1.msra.mxu0 0.0
  %1271 = vmatprep.subr.mxu0 0.0
  %1272 = vmatpush1.msra.mxu0 %v1168
  %1273 = vmatprep.subr.mxu0 0.0
  %1274 = vmatpush2.msra.mxu0 0.0
  %1275 = vmatprep.subr.mxu0 0.0
  %1276 = vmatpush2.msra.mxu0 0.0
  %1277 = vmatprep.subr.mxu0 0.0
  %1278 = vmatpush2.msra.mxu0 0.0
  %1279 = vmatprep.subr.mxu0 0.0
  %1280 = vmatpush2.msra.mxu0 0.0
  %1281 = vmatprep.subr.mxu0 0.0
  %1282 = vmatpush2.msra.mxu0 0.0
  %1283 = vmatprep.subr.mxu0 0.0
  %1284 = vmatpush2.msra.mxu0 0.0
  %1285 = vmatprep.subr.mxu0 0.0
  %1286 = vmatpush2.msra.mxu0 0.0
  %1287 = vmatprep.subr.mxu0 0.0
  %1288 = vmatpush2.msra.mxu0 0.0
  %1289 = vmatprep.subr.mxu0 0.0
  %1290 = vmatpush2.msra.mxu0 0.0
  %1291 = vmatprep.subr.mxu0 0.0
  %1292 = vmatpush2.msra.mxu0 0.0
  %1293 = vmatprep.subr.mxu0 0.0
  %1294 = vmatpush2.msra.mxu0 0.0
  %1295 = vmatprep.subr.mxu0 0.0
  %1296 = vmatpush2.msra.mxu0 0.0
  %1297 = vmatprep.subr.mxu0 0.0
  %1298 = vmatpush2.msra.mxu0 0.0
  %1299 = vmatprep.subr.mxu0 0.0
  %1300 = vmatpush2.msra.mxu0 0.0
  %1301 = vmatprep.subr.mxu0 0.0
  %1302 = vmatpush2.msra.mxu0 0.0
  %1303 = vmatprep.subr.mxu0 0.0
  %1304 = vmatpush2.msra.mxu0 0.0
  %1305 = vmatprep.mubr.f32.mxu0 0.0
  %1306 = vmatmul.mubr.f32.gmra.mxu0 %v1162
  %v1307 = vpop.f32.mrf.mxu0
  %v1308 = vadd.f32 0.0, %v1307
  %v1309 = vpop.f32.mrf.mxu0
  %1310 = vdwg.mxu0
  %v1311 = vadd.f32 %v1147, %v1237
  %v1312 = vadd.f32 %v1148, %v1239
  %v1313 = vadd.f32 %v1149, %v1308
  %s1314 = scalar_lea.vmem %s0, 64
  %v1315 = vld [vmem:[%s1314] sm:$0xff]
  %1316 = vrot.lane.b32.xlu0 %v11, 90
  %v1317 = vpop.permute.xlu0 %1316
  %1318 = vrot.lane.b32.xlu0 %v18, 90
  %v1319 = vpop.permute.xlu0 %1318
  %1320 = vrot.lane.b32.xlu0 %v12, 90
  %v1321 = vpop.permute.xlu0 %1320
  %vm1322 = vcmask 736256
  %v1323 = vsel %vm1322, %v1317, %v1319
  %v1324 = vsel %vm1322, %v1319, %v1321
  %v1326 = vsel %vm28, %v1315, 0
  %v1328 = vsel %vm32, %v1323, 0
  %v1330 = vsel %vm32, %v1324, 0
  %v1332 = vsel %vm32, %v1321, 0
  %1334 = vmatprep.subr.mxu0 0.0
  %1335 = vmatpush1.msra.mxu0 0.0
  %1336 = vmatprep.subr.mxu0 0.0
  %1337 = vmatpush1.msra.mxu0 0.0
  %1338 = vmatprep.subr.mxu0 0.0
  %1339 = vmatpush1.msra.mxu0 0.0
  %1340 = vmatprep.subr.mxu0 0.0
  %1341 = vmatpush1.msra.mxu0 0.0
  %1342 = vmatprep.subr.mxu0 0.0
  %1343 = vmatpush1.msra.mxu0 0.0
  %1344 = vmatprep.subr.mxu0 0.0
  %1345 = vmatpush1.msra.mxu0 0.0
  %1346 = vmatprep.subr.mxu0 0.0
  %1347 = vmatpush1.msra.mxu0 0.0
  %1348 = vmatprep.subr.mxu0 0.0
  %1349 = vmatpush1.msra.mxu0 0.0
  %1350 = vmatprep.subr.mxu0 0.0
  %1351 = vmatpush1.msra.mxu0 0.0
  %1352 = vmatprep.subr.mxu0 0.0
  %1353 = vmatpush1.msra.mxu0 0.0
  %1354 = vmatprep.subr.mxu0 0.0
  %1355 = vmatpush1.msra.mxu0 0.0
  %1356 = vmatprep.subr.mxu0 0.0
  %1357 = vmatpush1.msra.mxu0 0.0
  %1358 = vmatprep.subr.mxu0 0.0
  %1359 = vmatpush1.msra.mxu0 0.0
  %1360 = vmatprep.subr.mxu0 0.0
  %1361 = vmatpush1.msra.mxu0 0.0
  %1362 = vmatprep.subr.mxu0 0.0
  %1363 = vmatpush1.msra.mxu0 0.0
  %1364 = vmatprep.subr.mxu0 %v1330
  %1365 = vmatpush1.msra.mxu0 %v1328
  %1366 = vmatprep.subr.mxu0 0.0
  %1367 = vmatpush2.msra.mxu0 0.0
  %1368 = vmatprep.subr.mxu0 0.0
  %1369 = vmatpush2.msra.mxu0 0.0
  %1370 = vmatprep.subr.mxu0 0.0
  %1371 = vmatpush2.msra.mxu0 0.0
  %1372 = vmatprep.subr.mxu0 0.0
  %1373 = vmatpush2.msra.mxu0 0.0
  %1374 = vmatprep.subr.mxu0 0.0
  %1375 = vmatpush2.msra.mxu0 0.0
  %1376 = vmatprep.subr.mxu0 0.0
  %1377 = vmatpush2.msra.mxu0 0.0
  %1378 = vmatprep.subr.mxu0 0.0
  %1379 = vmatpush2.msra.mxu0 0.0
  %1380 = vmatprep.subr.mxu0 0.0
  %1381 = vmatpush2.msra.mxu0 0.0
  %1382 = vmatprep.subr.mxu0 0.0
  %1383 = vmatpush2.msra.mxu0 0.0
  %1384 = vmatprep.subr.mxu0 0.0
  %1385 = vmatpush2.msra.mxu0 0.0
  %1386 = vmatprep.subr.mxu0 0.0
  %1387 = vmatpush2.msra.mxu0 0.0
  %1388 = vmatprep.subr.mxu0 0.0
  %1389 = vmatpush2.msra.mxu0 0.0
  %1390 = vmatprep.subr.mxu0 0.0
  %1391 = vmatpush2.msra.mxu0 0.0
  %1392 = vmatprep.subr.mxu0 0.0
  %1393 = vmatpush2.msra.mxu0 0.0
  %1394 = vmatprep.subr.mxu0 0.0
  %1395 = vmatpush2.msra.mxu0 0.0
  %1396 = vmatprep.subr.mxu0 0.0
  %1397 = vmatpush2.msra.mxu0 0.0
  %1398 = vmatprep.mubr.f32.mxu0 0.0
  %1399 = vmatmul.mubr.f32.gmra.mxu0 %v1326
  %v1400 = vpop.f32.mrf.mxu0
  %v1401 = vadd.f32 0.0, %v1400
  %v1402 = vpop.f32.mrf.mxu0
  %v1403 = vadd.f32 0.0, %v1402
  %1404 = vdwg.mxu0
  %1405 = vmatprep.subr.mxu0 0.0
  %1406 = vmatpush1.msra.mxu0 0.0
  %1407 = vmatprep.subr.mxu0 0.0
  %1408 = vmatpush1.msra.mxu0 0.0
  %1409 = vmatprep.subr.mxu0 0.0
  %1410 = vmatpush1.msra.mxu0 0.0
  %1411 = vmatprep.subr.mxu0 0.0
  %1412 = vmatpush1.msra.mxu0 0.0
  %1413 = vmatprep.subr.mxu0 0.0
  %1414 = vmatpush1.msra.mxu0 0.0
  %1415 = vmatprep.subr.mxu0 0.0
  %1416 = vmatpush1.msra.mxu0 0.0
  %1417 = vmatprep.subr.mxu0 0.0
  %1418 = vmatpush1.msra.mxu0 0.0
  %1419 = vmatprep.subr.mxu0 0.0
  %1420 = vmatpush1.msra.mxu0 0.0
  %1421 = vmatprep.subr.mxu0 0.0
  %1422 = vmatpush1.msra.mxu0 0.0
  %1423 = vmatprep.subr.mxu0 0.0
  %1424 = vmatpush1.msra.mxu0 0.0
  %1425 = vmatprep.subr.mxu0 0.0
  %1426 = vmatpush1.msra.mxu0 0.0
  %1427 = vmatprep.subr.mxu0 0.0
  %1428 = vmatpush1.msra.mxu0 0.0
  %1429 = vmatprep.subr.mxu0 0.0
  %1430 = vmatpush1.msra.mxu0 0.0
  %1431 = vmatprep.subr.mxu0 0.0
  %1432 = vmatpush1.msra.mxu0 0.0
  %1433 = vmatprep.subr.mxu0 0.0
  %1434 = vmatpush1.msra.mxu0 0.0
  %1435 = vmatprep.subr.mxu0 0.0
  %1436 = vmatpush1.msra.mxu0 %v1332
  %1437 = vmatprep.subr.mxu0 0.0
  %1438 = vmatpush2.msra.mxu0 0.0
  %1439 = vmatprep.subr.mxu0 0.0
  %1440 = vmatpush2.msra.mxu0 0.0
  %1441 = vmatprep.subr.mxu0 0.0
  %1442 = vmatpush2.msra.mxu0 0.0
  %1443 = vmatprep.subr.mxu0 0.0
  %1444 = vmatpush2.msra.mxu0 0.0
  %1445 = vmatprep.subr.mxu0 0.0
  %1446 = vmatpush2.msra.mxu0 0.0
  %1447 = vmatprep.subr.mxu0 0.0
  %1448 = vmatpush2.msra.mxu0 0.0
  %1449 = vmatprep.subr.mxu0 0.0
  %1450 = vmatpush2.msra.mxu0 0.0
  %1451 = vmatprep.subr.mxu0 0.0
  %1452 = vmatpush2.msra.mxu0 0.0
  %1453 = vmatprep.subr.mxu0 0.0
  %1454 = vmatpush2.msra.mxu0 0.0
  %1455 = vmatprep.subr.mxu0 0.0
  %1456 = vmatpush2.msra.mxu0 0.0
  %1457 = vmatprep.subr.mxu0 0.0
  %1458 = vmatpush2.msra.mxu0 0.0
  %1459 = vmatprep.subr.mxu0 0.0
  %1460 = vmatpush2.msra.mxu0 0.0
  %1461 = vmatprep.subr.mxu0 0.0
  %1462 = vmatpush2.msra.mxu0 0.0
  %1463 = vmatprep.subr.mxu0 0.0
  %1464 = vmatpush2.msra.mxu0 0.0
  %1465 = vmatprep.subr.mxu0 0.0
  %1466 = vmatpush2.msra.mxu0 0.0
  %1467 = vmatprep.subr.mxu0 0.0
  %1468 = vmatpush2.msra.mxu0 0.0
  %1469 = vmatprep.mubr.f32.mxu0 0.0
  %1470 = vmatmul.mubr.f32.gmra.mxu0 %v1326
  %v1471 = vpop.f32.mrf.mxu0
  %v1472 = vadd.f32 0.0, %v1471
  %v1473 = vpop.f32.mrf.mxu0
  %1474 = vdwg.mxu0
  %v1475 = vadd.f32 %v1311, %v1401
  %v1476 = vadd.f32 %v1312, %v1403
  %v1477 = vadd.f32 %v1313, %v1472
  %v1478 = vmax.f32 %v1475, 0.0
  %v1479 = vmax.f32 %v1476, 0.0
  %v1480 = vmax.f32 %v1477, 0.0
  %1481 = vst [vmem:[%s2] sm:$0xff] %v1478
  %1482 = vst [vmem:[%s2 + $0x8] sm:$0xff] %v1479
  %vm1483 = vcmask 556032
  %1484 = vst.msk [vmem:[%s2 + $0x10] sm:$0xff] %vm1483, %v1480
  %s1485 = scalar_lea.vmem %s1, 12
  %v1486 = vld [vmem:[%s1485] sm:$0xff]
  %v1487 = vld [vmem:[%s1485 + $0x8] sm:$0xf]
  %v1488 = vld [vmem:[%s0] sm:$0xff]
  %v1489 = vld [vmem:[%s14] sm:$0xff]
  %v1492 = vcombine.high %v1486, %v1486
  %1493 = vrot.lane.b32.xlu0 %v1486, 127
  %v1494 = vpop.permute.xlu0 %1493
  %1495 = vrot.lane.b32.xlu0 %v1492, 127
  %v1496 = vpop.permute.xlu0 %1495
  %1497 = vrot.lane.b32.xlu0 %v1487, 127
  %v1498 = vpop.permute.xlu0 %1497
  %v1499 = vsel %vm25, %v1494, %v1496
  %v1500 = vsel %vm25, %v1496, %v1498
  %v1502 = vsel %vm28, %v1489, 0
  %v1504 = vsel %vm32, %v1499, 0
  %v1506 = vsel %vm32, %v1500, 0
  %v1508 = vsel %vm32, %v1498, 0
  %1510 = vmatprep.subr.mxu0 0.0
  %1511 = vmatpush1.msra.mxu0 0.0
  %1512 = vmatprep.subr.mxu0 0.0
  %1513 = vmatpush1.msra.mxu0 0.0
  %1514 = vmatprep.subr.mxu0 0.0
  %1515 = vmatpush1.msra.mxu0 0.0
  %1516 = vmatprep.subr.mxu0 0.0
  %1517 = vmatpush1.msra.mxu0 0.0
  %1518 = vmatprep.subr.mxu0 0.0
  %1519 = vmatpush1.msra.mxu0 0.0
  %1520 = vmatprep.subr.mxu0 0.0
  %1521 = vmatpush1.msra.mxu0 0.0
  %1522 = vmatprep.subr.mxu0 0.0
  %1523 = vmatpush1.msra.mxu0 0.0
  %1524 = vmatprep.subr.mxu0 0.0
  %1525 = vmatpush1.msra.mxu0 0.0
  %1526 = vmatprep.subr.mxu0 0.0
  %1527 = vmatpush1.msra.mxu0 0.0
  %1528 = vmatprep.subr.mxu0 0.0
  %1529 = vmatpush1.msra.mxu0 0.0
  %1530 = vmatprep.subr.mxu0 0.0
  %1531 = vmatpush1.msra.mxu0 0.0
  %1532 = vmatprep.subr.mxu0 0.0
  %1533 = vmatpush1.msra.mxu0 0.0
  %1534 = vmatprep.subr.mxu0 0.0
  %1535 = vmatpush1.msra.mxu0 0.0
  %1536 = vmatprep.subr.mxu0 0.0
  %1537 = vmatpush1.msra.mxu0 0.0
  %1538 = vmatprep.subr.mxu0 0.0
  %1539 = vmatpush1.msra.mxu0 0.0
  %1540 = vmatprep.subr.mxu0 %v1506
  %1541 = vmatpush1.msra.mxu0 %v1504
  %1542 = vmatprep.subr.mxu0 0.0
  %1543 = vmatpush2.msra.mxu0 0.0
  %1544 = vmatprep.subr.mxu0 0.0
  %1545 = vmatpush2.msra.mxu0 0.0
  %1546 = vmatprep.subr.mxu0 0.0
  %1547 = vmatpush2.msra.mxu0 0.0
  %1548 = vmatprep.subr.mxu0 0.0
  %1549 = vmatpush2.msra.mxu0 0.0
  %1550 = vmatprep.subr.mxu0 0.0
  %1551 = vmatpush2.msra.mxu0 0.0
  %1552 = vmatprep.subr.mxu0 0.0
  %1553 = vmatpush2.msra.mxu0 0.0
  %1554 = vmatprep.subr.mxu0 0.0
  %1555 = vmatpush2.msra.mxu0 0.0
  %1556 = vmatprep.subr.mxu0 0.0
  %1557 = vmatpush2.msra.mxu0 0.0
  %1558 = vmatprep.subr.mxu0 0.0
  %1559 = vmatpush2.msra.mxu0 0.0
  %1560 = vmatprep.subr.mxu0 0.0
  %1561 = vmatpush2.msra.mxu0 0.0
  %1562 = vmatprep.subr.mxu0 0.0
  %1563 = vmatpush2.msra.mxu0 0.0
  %1564 = vmatprep.subr.mxu0 0.0
  %1565 = vmatpush2.msra.mxu0 0.0
  %1566 = vmatprep.subr.mxu0 0.0
  %1567 = vmatpush2.msra.mxu0 0.0
  %1568 = vmatprep.subr.mxu0 0.0
  %1569 = vmatpush2.msra.mxu0 0.0
  %1570 = vmatprep.subr.mxu0 0.0
  %1571 = vmatpush2.msra.mxu0 0.0
  %1572 = vmatprep.subr.mxu0 0.0
  %1573 = vmatpush2.msra.mxu0 0.0
  %1574 = vmatprep.mubr.f32.mxu0 0.0
  %1575 = vmatmul.mubr.f32.gmra.mxu0 %v1502
  %v1576 = vpop.f32.mrf.mxu0
  %v1577 = vadd.f32 0.0, %v1576
  %v1578 = vpop.f32.mrf.mxu0
  %v1579 = vadd.f32 0.0, %v1578
  %1580 = vdwg.mxu0
  %1581 = vmatprep.subr.mxu0 0.0
  %1582 = vmatpush1.msra.mxu0 0.0
  %1583 = vmatprep.subr.mxu0 0.0
  %1584 = vmatpush1.msra.mxu0 0.0
  %1585 = vmatprep.subr.mxu0 0.0
  %1586 = vmatpush1.msra.mxu0 0.0
  %1587 = vmatprep.subr.mxu0 0.0
  %1588 = vmatpush1.msra.mxu0 0.0
  %1589 = vmatprep.subr.mxu0 0.0
  %1590 = vmatpush1.msra.mxu0 0.0
  %1591 = vmatprep.subr.mxu0 0.0
  %1592 = vmatpush1.msra.mxu0 0.0
  %1593 = vmatprep.subr.mxu0 0.0
  %1594 = vmatpush1.msra.mxu0 0.0
  %1595 = vmatprep.subr.mxu0 0.0
  %1596 = vmatpush1.msra.mxu0 0.0
  %1597 = vmatprep.subr.mxu0 0.0
  %1598 = vmatpush1.msra.mxu0 0.0
  %1599 = vmatprep.subr.mxu0 0.0
  %1600 = vmatpush1.msra.mxu0 0.0
  %1601 = vmatprep.subr.mxu0 0.0
  %1602 = vmatpush1.msra.mxu0 0.0
  %1603 = vmatprep.subr.mxu0 0.0
  %1604 = vmatpush1.msra.mxu0 0.0
  %1605 = vmatprep.subr.mxu0 0.0
  %1606 = vmatpush1.msra.mxu0 0.0
  %1607 = vmatprep.subr.mxu0 0.0
  %1608 = vmatpush1.msra.mxu0 0.0
  %1609 = vmatprep.subr.mxu0 0.0
  %1610 = vmatpush1.msra.mxu0 0.0
  %1611 = vmatprep.subr.mxu0 0.0
  %1612 = vmatpush1.msra.mxu0 %v1508
  %1613 = vmatprep.subr.mxu0 0.0
  %1614 = vmatpush2.msra.mxu0 0.0
  %1615 = vmatprep.subr.mxu0 0.0
  %1616 = vmatpush2.msra.mxu0 0.0
  %1617 = vmatprep.subr.mxu0 0.0
  %1618 = vmatpush2.msra.mxu0 0.0
  %1619 = vmatprep.subr.mxu0 0.0
  %1620 = vmatpush2.msra.mxu0 0.0
  %1621 = vmatprep.subr.mxu0 0.0
  %1622 = vmatpush2.msra.mxu0 0.0
  %1623 = vmatprep.subr.mxu0 0.0
  %1624 = vmatpush2.msra.mxu0 0.0
  %1625 = vmatprep.subr.mxu0 0.0
  %1626 = vmatpush2.msra.mxu0 0.0
  %1627 = vmatprep.subr.mxu0 0.0
  %1628 = vmatpush2.msra.mxu0 0.0
  %1629 = vmatprep.subr.mxu0 0.0
  %1630 = vmatpush2.msra.mxu0 0.0
  %1631 = vmatprep.subr.mxu0 0.0
  %1632 = vmatpush2.msra.mxu0 0.0
  %1633 = vmatprep.subr.mxu0 0.0
  %1634 = vmatpush2.msra.mxu0 0.0
  %1635 = vmatprep.subr.mxu0 0.0
  %1636 = vmatpush2.msra.mxu0 0.0
  %1637 = vmatprep.subr.mxu0 0.0
  %1638 = vmatpush2.msra.mxu0 0.0
  %1639 = vmatprep.subr.mxu0 0.0
  %1640 = vmatpush2.msra.mxu0 0.0
  %1641 = vmatprep.subr.mxu0 0.0
  %1642 = vmatpush2.msra.mxu0 0.0
  %1643 = vmatprep.subr.mxu0 0.0
  %1644 = vmatpush2.msra.mxu0 0.0
  %1645 = vmatprep.mubr.f32.mxu0 0.0
  %1646 = vmatmul.mubr.f32.gmra.mxu0 %v1502
  %v1647 = vpop.f32.mrf.mxu0
  %v1648 = vadd.f32 0.0, %v1647
  %v1649 = vpop.f32.mrf.mxu0
  %1650 = vdwg.mxu0
  %v1652 = vsel %vm28, %v1488, 0
  %v1654 = vsel %vm32, %v1486, 0
  %v1656 = vsel %vm32, %v1492, 0
  %v1658 = vsel %vm32, %v1487, 0
  %1660 = vmatprep.subr.mxu0 0.0
  %1661 = vmatpush1.msra.mxu0 0.0
  %1662 = vmatprep.subr.mxu0 0.0
  %1663 = vmatpush1.msra.mxu0 0.0
  %1664 = vmatprep.subr.mxu0 0.0
  %1665 = vmatpush1.msra.mxu0 0.0
  %1666 = vmatprep.subr.mxu0 0.0
  %1667 = vmatpush1.msra.mxu0 0.0
  %1668 = vmatprep.subr.mxu0 0.0
  %1669 = vmatpush1.msra.mxu0 0.0
  %1670 = vmatprep.subr.mxu0 0.0
  %1671 = vmatpush1.msra.mxu0 0.0
  %1672 = vmatprep.subr.mxu0 0.0
  %1673 = vmatpush1.msra.mxu0 0.0
  %1674 = vmatprep.subr.mxu0 0.0
  %1675 = vmatpush1.msra.mxu0 0.0
  %1676 = vmatprep.subr.mxu0 0.0
  %1677 = vmatpush1.msra.mxu0 0.0
  %1678 = vmatprep.subr.mxu0 0.0
  %1679 = vmatpush1.msra.mxu0 0.0
  %1680 = vmatprep.subr.mxu0 0.0
  %1681 = vmatpush1.msra.mxu0 0.0
  %1682 = vmatprep.subr.mxu0 0.0
  %1683 = vmatpush1.msra.mxu0 0.0
  %1684 = vmatprep.subr.mxu0 0.0
  %1685 = vmatpush1.msra.mxu0 0.0
  %1686 = vmatprep.subr.mxu0 0.0
  %1687 = vmatpush1.msra.mxu0 0.0
  %1688 = vmatprep.subr.mxu0 0.0
  %1689 = vmatpush1.msra.mxu0 0.0
  %1690 = vmatprep.subr.mxu0 %v1656
  %1691 = vmatpush1.msra.mxu0 %v1654
  %1692 = vmatprep.subr.mxu0 0.0
  %1693 = vmatpush2.msra.mxu0 0.0
  %1694 = vmatprep.subr.mxu0 0.0
  %1695 = vmatpush2.msra.mxu0 0.0
  %1696 = vmatprep.subr.mxu0 0.0
  %1697 = vmatpush2.msra.mxu0 0.0
  %1698 = vmatprep.subr.mxu0 0.0
  %1699 = vmatpush2.msra.mxu0 0.0
  %1700 = vmatprep.subr.mxu0 0.0
  %1701 = vmatpush2.msra.mxu0 0.0
  %1702 = vmatprep.subr.mxu0 0.0
  %1703 = vmatpush2.msra.mxu0 0.0
  %1704 = vmatprep.subr.mxu0 0.0
  %1705 = vmatpush2.msra.mxu0 0.0
  %1706 = vmatprep.subr.mxu0 0.0
  %1707 = vmatpush2.msra.mxu0 0.0
  %1708 = vmatprep.subr.mxu0 0.0
  %1709 = vmatpush2.msra.mxu0 0.0
  %1710 = vmatprep.subr.mxu0 0.0
  %1711 = vmatpush2.msra.mxu0 0.0
  %1712 = vmatprep.subr.mxu0 0.0
  %1713 = vmatpush2.msra.mxu0 0.0
  %1714 = vmatprep.subr.mxu0 0.0
  %1715 = vmatpush2.msra.mxu0 0.0
  %1716 = vmatprep.subr.mxu0 0.0
  %1717 = vmatpush2.msra.mxu0 0.0
  %1718 = vmatprep.subr.mxu0 0.0
  %1719 = vmatpush2.msra.mxu0 0.0
  %1720 = vmatprep.subr.mxu0 0.0
  %1721 = vmatpush2.msra.mxu0 0.0
  %1722 = vmatprep.subr.mxu0 0.0
  %1723 = vmatpush2.msra.mxu0 0.0
  %1724 = vmatprep.mubr.f32.mxu0 0.0
  %1725 = vmatmul.mubr.f32.gmra.mxu0 %v1652
  %v1726 = vpop.f32.mrf.mxu0
  %v1727 = vadd.f32 %v1577, %v1726
  %v1728 = vpop.f32.mrf.mxu0
  %v1729 = vadd.f32 %v1579, %v1728
  %1730 = vdwg.mxu0
  %1731 = vmatprep.subr.mxu0 0.0
  %1732 = vmatpush1.msra.mxu0 0.0
  %1733 = vmatprep.subr.mxu0 0.0
  %1734 = vmatpush1.msra.mxu0 0.0
  %1735 = vmatprep.subr.mxu0 0.0
  %1736 = vmatpush1.msra.mxu0 0.0
  %1737 = vmatprep.subr.mxu0 0.0
  %1738 = vmatpush1.msra.mxu0 0.0
  %1739 = vmatprep.subr.mxu0 0.0
  %1740 = vmatpush1.msra.mxu0 0.0
  %1741 = vmatprep.subr.mxu0 0.0
  %1742 = vmatpush1.msra.mxu0 0.0
  %1743 = vmatprep.subr.mxu0 0.0
  %1744 = vmatpush1.msra.mxu0 0.0
  %1745 = vmatprep.subr.mxu0 0.0
  %1746 = vmatpush1.msra.mxu0 0.0
  %1747 = vmatprep.subr.mxu0 0.0
  %1748 = vmatpush1.msra.mxu0 0.0
  %1749 = vmatprep.subr.mxu0 0.0
  %1750 = vmatpush1.msra.mxu0 0.0
  %1751 = vmatprep.subr.mxu0 0.0
  %1752 = vmatpush1.msra.mxu0 0.0
  %1753 = vmatprep.subr.mxu0 0.0
  %1754 = vmatpush1.msra.mxu0 0.0
  %1755 = vmatprep.subr.mxu0 0.0
  %1756 = vmatpush1.msra.mxu0 0.0
  %1757 = vmatprep.subr.mxu0 0.0
  %1758 = vmatpush1.msra.mxu0 0.0
  %1759 = vmatprep.subr.mxu0 0.0
  %1760 = vmatpush1.msra.mxu0 0.0
  %1761 = vmatprep.subr.mxu0 0.0
  %1762 = vmatpush1.msra.mxu0 %v1658
  %1763 = vmatprep.subr.mxu0 0.0
  %1764 = vmatpush2.msra.mxu0 0.0
  %1765 = vmatprep.subr.mxu0 0.0
  %1766 = vmatpush2.msra.mxu0 0.0
  %1767 = vmatprep.subr.mxu0 0.0
  %1768 = vmatpush2.msra.mxu0 0.0
  %1769 = vmatprep.subr.mxu0 0.0
  %1770 = vmatpush2.msra.mxu0 0.0
  %1771 = vmatprep.subr.mxu0 0.0
  %1772 = vmatpush2.msra.mxu0 0.0
  %1773 = vmatprep.subr.mxu0 0.0
  %1774 = vmatpush2.msra.mxu0 0.0
  %1775 = vmatprep.subr.mxu0 0.0
  %1776 = vmatpush2.msra.mxu0 0.0
  %1777 = vmatprep.subr.mxu0 0.0
  %1778 = vmatpush2.msra.mxu0 0.0
  %1779 = vmatprep.subr.mxu0 0.0
  %1780 = vmatpush2.msra.mxu0 0.0
  %1781 = vmatprep.subr.mxu0 0.0
  %1782 = vmatpush2.msra.mxu0 0.0
  %1783 = vmatprep.subr.mxu0 0.0
  %1784 = vmatpush2.msra.mxu0 0.0
  %1785 = vmatprep.subr.mxu0 0.0
  %1786 = vmatpush2.msra.mxu0 0.0
  %1787 = vmatprep.subr.mxu0 0.0
  %1788 = vmatpush2.msra.mxu0 0.0
  %1789 = vmatprep.subr.mxu0 0.0
  %1790 = vmatpush2.msra.mxu0 0.0
  %1791 = vmatprep.subr.mxu0 0.0
  %1792 = vmatpush2.msra.mxu0 0.0
  %1793 = vmatprep.subr.mxu0 0.0
  %1794 = vmatpush2.msra.mxu0 0.0
  %1795 = vmatprep.mubr.f32.mxu0 0.0
  %1796 = vmatmul.mubr.f32.gmra.mxu0 %v1652
  %v1797 = vpop.f32.mrf.mxu0
  %v1798 = vadd.f32 %v1648, %v1797
  %v1799 = vpop.f32.mrf.mxu0
  %1800 = vdwg.mxu0
  %v1801 = vld [vmem:[%s330] sm:$0xff]
  %1802 = vrot.lane.b32.xlu0 %v1486, 126
  %v1803 = vpop.permute.xlu0 %1802
  %1804 = vrot.lane.b32.xlu0 %v1492, 126
  %v1805 = vpop.permute.xlu0 %1804
  %1806 = vrot.lane.b32.xlu0 %v1487, 126
  %v1807 = vpop.permute.xlu0 %1806
  %v1808 = vsel %vm338, %v1803, %v1805
  %v1809 = vsel %vm338, %v1805, %v1807
  %v1811 = vsel %vm28, %v1801, 0
  %v1813 = vsel %vm32, %v1808, 0
  %v1815 = vsel %vm32, %v1809, 0
  %v1817 = vsel %vm32, %v1807, 0
  %1819 = vmatprep.subr.mxu0 0.0
  %1820 = vmatpush1.msra.mxu0 0.0
  %1821 = vmatprep.subr.mxu0 0.0
  %1822 = vmatpush1.msra.mxu0 0.0
  %1823 = vmatprep.subr.mxu0 0.0
  %1824 = vmatpush1.msra.mxu0 0.0
  %1825 = vmatprep.subr.mxu0 0.0
  %1826 = vmatpush1.msra.mxu0 0.0
  %1827 = vmatprep.subr.mxu0 0.0
  %1828 = vmatpush1.msra.mxu0 0.0
  %1829 = vmatprep.subr.mxu0 0.0
  %1830 = vmatpush1.msra.mxu0 0.0
  %1831 = vmatprep.subr.mxu0 0.0
  %1832 = vmatpush1.msra.mxu0 0.0
  %1833 = vmatprep.subr.mxu0 0.0
  %1834 = vmatpush1.msra.mxu0 0.0
  %1835 = vmatprep.subr.mxu0 0.0
  %1836 = vmatpush1.msra.mxu0 0.0
  %1837 = vmatprep.subr.mxu0 0.0
  %1838 = vmatpush1.msra.mxu0 0.0
  %1839 = vmatprep.subr.mxu0 0.0
  %1840 = vmatpush1.msra.mxu0 0.0
  %1841 = vmatprep.subr.mxu0 0.0
  %1842 = vmatpush1.msra.mxu0 0.0
  %1843 = vmatprep.subr.mxu0 0.0
  %1844 = vmatpush1.msra.mxu0 0.0
  %1845 = vmatprep.subr.mxu0 0.0
  %1846 = vmatpush1.msra.mxu0 0.0
  %1847 = vmatprep.subr.mxu0 0.0
  %1848 = vmatpush1.msra.mxu0 0.0
  %1849 = vmatprep.subr.mxu0 %v1815
  %1850 = vmatpush1.msra.mxu0 %v1813
  %1851 = vmatprep.subr.mxu0 0.0
  %1852 = vmatpush2.msra.mxu0 0.0
  %1853 = vmatprep.subr.mxu0 0.0
  %1854 = vmatpush2.msra.mxu0 0.0
  %1855 = vmatprep.subr.mxu0 0.0
  %1856 = vmatpush2.msra.mxu0 0.0
  %1857 = vmatprep.subr.mxu0 0.0
  %1858 = vmatpush2.msra.mxu0 0.0
  %1859 = vmatprep.subr.mxu0 0.0
  %1860 = vmatpush2.msra.mxu0 0.0
  %1861 = vmatprep.subr.mxu0 0.0
  %1862 = vmatpush2.msra.mxu0 0.0
  %1863 = vmatprep.subr.mxu0 0.0
  %1864 = vmatpush2.msra.mxu0 0.0
  %1865 = vmatprep.subr.mxu0 0.0
  %1866 = vmatpush2.msra.mxu0 0.0
  %1867 = vmatprep.subr.mxu0 0.0
  %1868 = vmatpush2.msra.mxu0 0.0
  %1869 = vmatprep.subr.mxu0 0.0
  %1870 = vmatpush2.msra.mxu0 0.0
  %1871 = vmatprep.subr.mxu0 0.0
  %1872 = vmatpush2.msra.mxu0 0.0
  %1873 = vmatprep.subr.mxu0 0.0
  %1874 = vmatpush2.msra.mxu0 0.0
  %1875 = vmatprep.subr.mxu0 0.0
  %1876 = vmatpush2.msra.mxu0 0.0
  %1877 = vmatprep.subr.mxu0 0.0
  %1878 = vmatpush2.msra.mxu0 0.0
  %1879 = vmatprep.subr.mxu0 0.0
  %1880 = vmatpush2.msra.mxu0 0.0
  %1881 = vmatprep.subr.mxu0 0.0
  %1882 = vmatpush2.msra.mxu0 0.0
  %1883 = vmatprep.mubr.f32.mxu0 0.0
  %1884 = vmatmul.mubr.f32.gmra.mxu0 %v1811
  %v1885 = vpop.f32.mrf.mxu0
  %v1886 = vadd.f32 0.0, %v1885
  %v1887 = vpop.f32.mrf.mxu0
  %v1888 = vadd.f32 0.0, %v1887
  %1889 = vdwg.mxu0
  %1890 = vmatprep.subr.mxu0 0.0
  %1891 = vmatpush1.msra.mxu0 0.0
  %1892 = vmatprep.subr.mxu0 0.0
  %1893 = vmatpush1.msra.mxu0 0.0
  %1894 = vmatprep.subr.mxu0 0.0
  %1895 = vmatpush1.msra.mxu0 0.0
  %1896 = vmatprep.subr.mxu0 0.0
  %1897 = vmatpush1.msra.mxu0 0.0
  %1898 = vmatprep.subr.mxu0 0.0
  %1899 = vmatpush1.msra.mxu0 0.0
  %1900 = vmatprep.subr.mxu0 0.0
  %1901 = vmatpush1.msra.mxu0 0.0
  %1902 = vmatprep.subr.mxu0 0.0
  %1903 = vmatpush1.msra.mxu0 0.0
  %1904 = vmatprep.subr.mxu0 0.0
  %1905 = vmatpush1.msra.mxu0 0.0
  %1906 = vmatprep.subr.mxu0 0.0
  %1907 = vmatpush1.msra.mxu0 0.0
  %1908 = vmatprep.subr.mxu0 0.0
  %1909 = vmatpush1.msra.mxu0 0.0
  %1910 = vmatprep.subr.mxu0 0.0
  %1911 = vmatpush1.msra.mxu0 0.0
  %1912 = vmatprep.subr.mxu0 0.0
  %1913 = vmatpush1.msra.mxu0 0.0
  %1914 = vmatprep.subr.mxu0 0.0
  %1915 = vmatpush1.msra.mxu0 0.0
  %1916 = vmatprep.subr.mxu0 0.0
  %1917 = vmatpush1.msra.mxu0 0.0
  %1918 = vmatprep.subr.mxu0 0.0
  %1919 = vmatpush1.msra.mxu0 0.0
  %1920 = vmatprep.subr.mxu0 0.0
  %1921 = vmatpush1.msra.mxu0 %v1817
  %1922 = vmatprep.subr.mxu0 0.0
  %1923 = vmatpush2.msra.mxu0 0.0
  %1924 = vmatprep.subr.mxu0 0.0
  %1925 = vmatpush2.msra.mxu0 0.0
  %1926 = vmatprep.subr.mxu0 0.0
  %1927 = vmatpush2.msra.mxu0 0.0
  %1928 = vmatprep.subr.mxu0 0.0
  %1929 = vmatpush2.msra.mxu0 0.0
  %1930 = vmatprep.subr.mxu0 0.0
  %1931 = vmatpush2.msra.mxu0 0.0
  %1932 = vmatprep.subr.mxu0 0.0
  %1933 = vmatpush2.msra.mxu0 0.0
  %1934 = vmatprep.subr.mxu0 0.0
  %1935 = vmatpush2.msra.mxu0 0.0
  %1936 = vmatprep.subr.mxu0 0.0
  %1937 = vmatpush2.msra.mxu0 0.0
  %1938 = vmatprep.subr.mxu0 0.0
  %1939 = vmatpush2.msra.mxu0 0.0
  %1940 = vmatprep.subr.mxu0 0.0
  %1941 = vmatpush2.msra.mxu0 0.0
  %1942 = vmatprep.subr.mxu0 0.0
  %1943 = vmatpush2.msra.mxu0 0.0
  %1944 = vmatprep.subr.mxu0 0.0
  %1945 = vmatpush2.msra.mxu0 0.0
  %1946 = vmatprep.subr.mxu0 0.0
  %1947 = vmatpush2.msra.mxu0 0.0
  %1948 = vmatprep.subr.mxu0 0.0
  %1949 = vmatpush2.msra.mxu0 0.0
  %1950 = vmatprep.subr.mxu0 0.0
  %1951 = vmatpush2.msra.mxu0 0.0
  %1952 = vmatprep.subr.mxu0 0.0
  %1953 = vmatpush2.msra.mxu0 0.0
  %1954 = vmatprep.mubr.f32.mxu0 0.0
  %1955 = vmatmul.mubr.f32.gmra.mxu0 %v1811
  %v1956 = vpop.f32.mrf.mxu0
  %v1957 = vadd.f32 0.0, %v1956
  %v1958 = vpop.f32.mrf.mxu0
  %1959 = vdwg.mxu0
  %v1960 = vadd.f32 %v1727, %v1886
  %v1961 = vadd.f32 %v1729, %v1888
  %v1962 = vadd.f32 %v1798, %v1957
  %v1963 = vld [vmem:[%s494] sm:$0xff]
  %1964 = vrot.lane.b32.xlu0 %v1486, 110
  %v1965 = vpop.permute.xlu0 %1964
  %1966 = vrot.lane.b32.xlu0 %v1492, 110
  %v1967 = vpop.permute.xlu0 %1966
  %1968 = vrot.lane.b32.xlu0 %v1487, 110
  %v1969 = vpop.permute.xlu0 %1968
  %v1970 = vsel %vm502, %v1965, %v1967
  %v1971 = vsel %vm502, %v1967, %v1969
  %v1973 = vsel %vm28, %v1963, 0
  %v1975 = vsel %vm32, %v1970, 0
  %v1977 = vsel %vm32, %v1971, 0
  %v1979 = vsel %vm32, %v1969, 0
  %1981 = vmatprep.subr.mxu0 0.0
  %1982 = vmatpush1.msra.mxu0 0.0
  %1983 = vmatprep.subr.mxu0 0.0
  %1984 = vmatpush1.msra.mxu0 0.0
  %1985 = vmatprep.subr.mxu0 0.0
  %1986 = vmatpush1.msra.mxu0 0.0
  %1987 = vmatprep.subr.mxu0 0.0
  %1988 = vmatpush1.msra.mxu0 0.0
  %1989 = vmatprep.subr.mxu0 0.0
  %1990 = vmatpush1.msra.mxu0 0.0
  %1991 = vmatprep.subr.mxu0 0.0
  %1992 = vmatpush1.msra.mxu0 0.0
  %1993 = vmatprep.subr.mxu0 0.0
  %1994 = vmatpush1.msra.mxu0 0.0
  %1995 = vmatprep.subr.mxu0 0.0
  %1996 = vmatpush1.msra.mxu0 0.0
  %1997 = vmatprep.subr.mxu0 0.0
  %1998 = vmatpush1.msra.mxu0 0.0
  %1999 = vmatprep.subr.mxu0 0.0
  %2000 = vmatpush1.msra.mxu0 0.0
  %2001 = vmatprep.subr.mxu0 0.0
  %2002 = vmatpush1.msra.mxu0 0.0
  %2003 = vmatprep.subr.mxu0 0.0
  %2004 = vmatpush1.msra.mxu0 0.0
  %2005 = vmatprep.subr.mxu0 0.0
  %2006 = vmatpush1.msra.mxu0 0.0
  %2007 = vmatprep.subr.mxu0 0.0
  %2008 = vmatpush1.msra.mxu0 0.0
  %2009 = vmatprep.subr.mxu0 0.0
  %2010 = vmatpush1.msra.mxu0 0.0
  %2011 = vmatprep.subr.mxu0 %v1977
  %2012 = vmatpush1.msra.mxu0 %v1975
  %2013 = vmatprep.subr.mxu0 0.0
  %2014 = vmatpush2.msra.mxu0 0.0
  %2015 = vmatprep.subr.mxu0 0.0
  %2016 = vmatpush2.msra.mxu0 0.0
  %2017 = vmatprep.subr.mxu0 0.0
  %2018 = vmatpush2.msra.mxu0 0.0
  %2019 = vmatprep.subr.mxu0 0.0
  %2020 = vmatpush2.msra.mxu0 0.0
  %2021 = vmatprep.subr.mxu0 0.0
  %2022 = vmatpush2.msra.mxu0 0.0
  %2023 = vmatprep.subr.mxu0 0.0
  %2024 = vmatpush2.msra.mxu0 0.0
  %2025 = vmatprep.subr.mxu0 0.0
  %2026 = vmatpush2.msra.mxu0 0.0
  %2027 = vmatprep.subr.mxu0 0.0
  %2028 = vmatpush2.msra.mxu0 0.0
  %2029 = vmatprep.subr.mxu0 0.0
  %2030 = vmatpush2.msra.mxu0 0.0
  %2031 = vmatprep.subr.mxu0 0.0
  %2032 = vmatpush2.msra.mxu0 0.0
  %2033 = vmatprep.subr.mxu0 0.0
  %2034 = vmatpush2.msra.mxu0 0.0
  %2035 = vmatprep.subr.mxu0 0.0
  %2036 = vmatpush2.msra.mxu0 0.0
  %2037 = vmatprep.subr.mxu0 0.0
  %2038 = vmatpush2.msra.mxu0 0.0
  %2039 = vmatprep.subr.mxu0 0.0
  %2040 = vmatpush2.msra.mxu0 0.0
  %2041 = vmatprep.subr.mxu0 0.0
  %2042 = vmatpush2.msra.mxu0 0.0
  %2043 = vmatprep.subr.mxu0 0.0
  %2044 = vmatpush2.msra.mxu0 0.0
  %2045 = vmatprep.mubr.f32.mxu0 0.0
  %2046 = vmatmul.mubr.f32.gmra.mxu0 %v1973
  %v2047 = vpop.f32.mrf.mxu0
  %v2048 = vadd.f32 0.0, %v2047
  %v2049 = vpop.f32.mrf.mxu0
  %v2050 = vadd.f32 0.0, %v2049
  %2051 = vdwg.mxu0
  %2052 = vmatprep.subr.mxu0 0.0
  %2053 = vmatpush1.msra.mxu0 0.0
  %2054 = vmatprep.subr.mxu0 0.0
  %2055 = vmatpush1.msra.mxu0 0.0
  %2056 = vmatprep.subr.mxu0 0.0
  %2057 = vmatpush1.msra.mxu0 0.0
  %2058 = vmatprep.subr.mxu0 0.0
  %2059 = vmatpush1.msra.mxu0 0.0
  %2060 = vmatprep.subr.mxu0 0.0
  %2061 = vmatpush1.msra.mxu0 0.0
  %2062 = vmatprep.subr.mxu0 0.0
  %2063 = vmatpush1.msra.mxu0 0.0
  %2064 = vmatprep.subr.mxu0 0.0
  %2065 = vmatpush1.msra.mxu0 0.0
  %2066 = vmatprep.subr.mxu0 0.0
  %2067 = vmatpush1.msra.mxu0 0.0
  %2068 = vmatprep.subr.mxu0 0.0
  %2069 = vmatpush1.msra.mxu0 0.0
  %2070 = vmatprep.subr.mxu0 0.0
  %2071 = vmatpush1.msra.mxu0 0.0
  %2072 = vmatprep.subr.mxu0 0.0
  %2073 = vmatpush1.msra.mxu0 0.0
  %2074 = vmatprep.subr.mxu0 0.0
  %2075 = vmatpush1.msra.mxu0 0.0
  %2076 = vmatprep.subr.mxu0 0.0
  %2077 = vmatpush1.msra.mxu0 0.0
  %2078 = vmatprep.subr.mxu0 0.0
  %2079 = vmatpush1.msra.mxu0 0.0
  %2080 = vmatprep.subr.mxu0 0.0
  %2081 = vmatpush1.msra.mxu0 0.0
  %2082 = vmatprep.subr.mxu0 0.0
  %2083 = vmatpush1.msra.mxu0 %v1979
  %2084 = vmatprep.subr.mxu0 0.0
  %2085 = vmatpush2.msra.mxu0 0.0
  %2086 = vmatprep.subr.mxu0 0.0
  %2087 = vmatpush2.msra.mxu0 0.0
  %2088 = vmatprep.subr.mxu0 0.0
  %2089 = vmatpush2.msra.mxu0 0.0
  %2090 = vmatprep.subr.mxu0 0.0
  %2091 = vmatpush2.msra.mxu0 0.0
  %2092 = vmatprep.subr.mxu0 0.0
  %2093 = vmatpush2.msra.mxu0 0.0
  %2094 = vmatprep.subr.mxu0 0.0
  %2095 = vmatpush2.msra.mxu0 0.0
  %2096 = vmatprep.subr.mxu0 0.0
  %2097 = vmatpush2.msra.mxu0 0.0
  %2098 = vmatprep.subr.mxu0 0.0
  %2099 = vmatpush2.msra.mxu0 0.0
  %2100 = vmatprep.subr.mxu0 0.0
  %2101 = vmatpush2.msra.mxu0 0.0
  %2102 = vmatprep.subr.mxu0 0.0
  %2103 = vmatpush2.msra.mxu0 0.0
  %2104 = vmatprep.subr.mxu0 0.0
  %2105 = vmatpush2.msra.mxu0 0.0
  %2106 = vmatprep.subr.mxu0 0.0
  %2107 = vmatpush2.msra.mxu0 0.0
  %2108 = vmatprep.subr.mxu0 0.0
  %2109 = vmatpush2.msra.mxu0 0.0
  %2110 = vmatprep.subr.mxu0 0.0
  %2111 = vmatpush2.msra.mxu0 0.0
  %2112 = vmatprep.subr.mxu0 0.0
  %2113 = vmatpush2.msra.mxu0 0.0
  %2114 = vmatprep.subr.mxu0 0.0
  %2115 = vmatpush2.msra.mxu0 0.0
  %2116 = vmatprep.mubr.f32.mxu0 0.0
  %2117 = vmatmul.mubr.f32.gmra.mxu0 %v1973
  %v2118 = vpop.f32.mrf.mxu0
  %v2119 = vadd.f32 0.0, %v2118
  %v2120 = vpop.f32.mrf.mxu0
  %2121 = vdwg.mxu0
  %v2122 = vadd.f32 %v1960, %v2048
  %v2123 = vadd.f32 %v1961, %v2050
  %v2124 = vadd.f32 %v1962, %v2119
  %v2125 = vld [vmem:[%s658] sm:$0xff]
  %2126 = vrot.lane.b32.xlu0 %v1486, 109
  %v2127 = vpop.permute.xlu0 %2126
  %2128 = vrot.lane.b32.xlu0 %v1492, 109
  %v2129 = vpop.permute.xlu0 %2128
  %2130 = vrot.lane.b32.xlu0 %v1487, 109
  %v2131 = vpop.permute.xlu0 %2130
  %v2132 = vsel %vm666, %v2127, %v2129
  %v2133 = vsel %vm666, %v2129, %v2131
  %v2135 = vsel %vm28, %v2125, 0
  %v2137 = vsel %vm32, %v2132, 0
  %v2139 = vsel %vm32, %v2133, 0
  %v2141 = vsel %vm32, %v2131, 0
  %2143 = vmatprep.subr.mxu0 0.0
  %2144 = vmatpush1.msra.mxu0 0.0
  %2145 = vmatprep.subr.mxu0 0.0
  %2146 = vmatpush1.msra.mxu0 0.0
  %2147 = vmatprep.subr.mxu0 0.0
  %2148 = vmatpush1.msra.mxu0 0.0
  %2149 = vmatprep.subr.mxu0 0.0
  %2150 = vmatpush1.msra.mxu0 0.0
  %2151 = vmatprep.subr.mxu0 0.0
  %2152 = vmatpush1.msra.mxu0 0.0
  %2153 = vmatprep.subr.mxu0 0.0
  %2154 = vmatpush1.msra.mxu0 0.0
  %2155 = vmatprep.subr.mxu0 0.0
  %2156 = vmatpush1.msra.mxu0 0.0
  %2157 = vmatprep.subr.mxu0 0.0
  %2158 = vmatpush1.msra.mxu0 0.0
  %2159 = vmatprep.subr.mxu0 0.0
  %2160 = vmatpush1.msra.mxu0 0.0
  %2161 = vmatprep.subr.mxu0 0.0
  %2162 = vmatpush1.msra.mxu0 0.0
  %2163 = vmatprep.subr.mxu0 0.0
  %2164 = vmatpush1.msra.mxu0 0.0
  %2165 = vmatprep.subr.mxu0 0.0
  %2166 = vmatpush1.msra.mxu0 0.0
  %2167 = vmatprep.subr.mxu0 0.0
  %2168 = vmatpush1.msra.mxu0 0.0
  %2169 = vmatprep.subr.mxu0 0.0
  %2170 = vmatpush1.msra.mxu0 0.0
  %2171 = vmatprep.subr.mxu0 0.0
  %2172 = vmatpush1.msra.mxu0 0.0
  %2173 = vmatprep.subr.mxu0 %v2139
  %2174 = vmatpush1.msra.mxu0 %v2137
  %2175 = vmatprep.subr.mxu0 0.0
  %2176 = vmatpush2.msra.mxu0 0.0
  %2177 = vmatprep.subr.mxu0 0.0
  %2178 = vmatpush2.msra.mxu0 0.0
  %2179 = vmatprep.subr.mxu0 0.0
  %2180 = vmatpush2.msra.mxu0 0.0
  %2181 = vmatprep.subr.mxu0 0.0
  %2182 = vmatpush2.msra.mxu0 0.0
  %2183 = vmatprep.subr.mxu0 0.0
  %2184 = vmatpush2.msra.mxu0 0.0
  %2185 = vmatprep.subr.mxu0 0.0
  %2186 = vmatpush2.msra.mxu0 0.0
  %2187 = vmatprep.subr.mxu0 0.0
  %2188 = vmatpush2.msra.mxu0 0.0
  %2189 = vmatprep.subr.mxu0 0.0
  %2190 = vmatpush2.msra.mxu0 0.0
  %2191 = vmatprep.subr.mxu0 0.0
  %2192 = vmatpush2.msra.mxu0 0.0
  %2193 = vmatprep.subr.mxu0 0.0
  %2194 = vmatpush2.msra.mxu0 0.0
  %2195 = vmatprep.subr.mxu0 0.0
  %2196 = vmatpush2.msra.mxu0 0.0
  %2197 = vmatprep.subr.mxu0 0.0
  %2198 = vmatpush2.msra.mxu0 0.0
  %2199 = vmatprep.subr.mxu0 0.0
  %2200 = vmatpush2.msra.mxu0 0.0
  %2201 = vmatprep.subr.mxu0 0.0
  %2202 = vmatpush2.msra.mxu0 0.0
  %2203 = vmatprep.subr.mxu0 0.0
  %2204 = vmatpush2.msra.mxu0 0.0
  %2205 = vmatprep.subr.mxu0 0.0
  %2206 = vmatpush2.msra.mxu0 0.0
  %2207 = vmatprep.mubr.f32.mxu0 0.0
  %2208 = vmatmul.mubr.f32.gmra.mxu0 %v2135
  %v2209 = vpop.f32.mrf.mxu0
  %v2210 = vadd.f32 0.0, %v2209
  %v2211 = vpop.f32.mrf.mxu0
  %v2212 = vadd.f32 0.0, %v2211
  %2213 = vdwg.mxu0
  %2214 = vmatprep.subr.mxu0 0.0
  %2215 = vmatpush1.msra.mxu0 0.0
  %2216 = vmatprep.subr.mxu0 0.0
  %2217 = vmatpush1.msra.mxu0 0.0
  %2218 = vmatprep.subr.mxu0 0.0
  %2219 = vmatpush1.msra.mxu0 0.0
  %2220 = vmatprep.subr.mxu0 0.0
  %2221 = vmatpush1.msra.mxu0 0.0
  %2222 = vmatprep.subr.mxu0 0.0
  %2223 = vmatpush1.msra.mxu0 0.0
  %2224 = vmatprep.subr.mxu0 0.0
  %2225 = vmatpush1.msra.mxu0 0.0
  %2226 = vmatprep.subr.mxu0 0.0
  %2227 = vmatpush1.msra.mxu0 0.0
  %2228 = vmatprep.subr.mxu0 0.0
  %2229 = vmatpush1.msra.mxu0 0.0
  %2230 = vmatprep.subr.mxu0 0.0
  %2231 = vmatpush1.msra.mxu0 0.0
  %2232 = vmatprep.subr.mxu0 0.0
  %2233 = vmatpush1.msra.mxu0 0.0
  %2234 = vmatprep.subr.mxu0 0.0
  %2235 = vmatpush1.msra.mxu0 0.0
  %2236 = vmatprep.subr.mxu0 0.0
  %2237 = vmatpush1.msra.mxu0 0.0
  %2238 = vmatprep.subr.mxu0 0.0
  %2239 = vmatpush1.msra.mxu0 0.0
  %2240 = vmatprep.subr.mxu0 0.0
  %2241 = vmatpush1.msra.mxu0 0.0
  %2242 = vmatprep.subr.mxu0 0.0
  %2243 = vmatpush1.msra.mxu0 0.0
  %2244 = vmatprep.subr.mxu0 0.0
  %2245 = vmatpush1.msra.mxu0 %v2141
  %2246 = vmatprep.subr.mxu0 0.0
  %2247 = vmatpush2.msra.mxu0 0.0
  %2248 = vmatprep.subr.mxu0 0.0
  %2249 = vmatpush2.msra.mxu0 0.0
  %2250 = vmatprep.subr.mxu0 0.0
  %2251 = vmatpush2.msra.mxu0 0.0
  %2252 = vmatprep.subr.mxu0 0.0
  %2253 = vmatpush2.msra.mxu0 0.0
  %2254 = vmatprep.subr.mxu0 0.0
  %2255 = vmatpush2.msra.mxu0 0.0
  %2256 = vmatprep.subr.mxu0 0.0
  %2257 = vmatpush2.msra.mxu0 0.0
  %2258 = vmatprep.subr.mxu0 0.0
  %2259 = vmatpush2.msra.mxu0 0.0
  %2260 = vmatprep.subr.mxu0 0.0
  %2261 = vmatpush2.msra.mxu0 0.0
  %2262 = vmatprep.subr.mxu0 0.0
  %2263 = vmatpush2.msra.mxu0 0.0
  %2264 = vmatprep.subr.mxu0 0.0
  %2265 = vmatpush2.msra.mxu0 0.0
  %2266 = vmatprep.subr.mxu0 0.0
  %2267 = vmatpush2.msra.mxu0 0.0
  %2268 = vmatprep.subr.mxu0 0.0
  %2269 = vmatpush2.msra.mxu0 0.0
  %2270 = vmatprep.subr.mxu0 0.0
  %2271 = vmatpush2.msra.mxu0 0.0
  %2272 = vmatprep.subr.mxu0 0.0
  %2273 = vmatpush2.msra.mxu0 0.0
  %2274 = vmatprep.subr.mxu0 0.0
  %2275 = vmatpush2.msra.mxu0 0.0
  %2276 = vmatprep.subr.mxu0 0.0
  %2277 = vmatpush2.msra.mxu0 0.0
  %2278 = vmatprep.mubr.f32.mxu0 0.0
  %2279 = vmatmul.mubr.f32.gmra.mxu0 %v2135
  %v2280 = vpop.f32.mrf.mxu0
  %v2281 = vadd.f32 0.0, %v2280
  %v2282 = vpop.f32.mrf.mxu0
  %2283 = vdwg.mxu0
  %v2284 = vadd.f32 %v2122, %v2210
  %v2285 = vadd.f32 %v2123, %v2212
  %v2286 = vadd.f32 %v2124, %v2281
  %v2287 = vld [vmem:[%s822] sm:$0xff]
  %2288 = vrot.lane.b32.xlu0 %v1486, 108
  %v2289 = vpop.permute.xlu0 %2288
  %2290 = vrot.lane.b32.xlu0 %v1492, 108
  %v2291 = vpop.permute.xlu0 %2290
  %2292 = vrot.lane.b32.xlu0 %v1487, 108
  %v2293 = vpop.permute.xlu0 %2292
  %v2294 = vsel %vm830, %v2289, %v2291
  %v2295 = vsel %vm830, %v2291, %v2293
  %v2297 = vsel %vm28, %v2287, 0
  %v2299 = vsel %vm32, %v2294, 0
  %v2301 = vsel %vm32, %v2295, 0
  %v2303 = vsel %vm32, %v2293, 0
  %2305 = vmatprep.subr.mxu0 0.0
  %2306 = vmatpush1.msra.mxu0 0.0
  %2307 = vmatprep.subr.mxu0 0.0
  %2308 = vmatpush1.msra.mxu0 0.0
  %2309 = vmatprep.subr.mxu0 0.0
  %2310 = vmatpush1.msra.mxu0 0.0
  %2311 = vmatprep.subr.mxu0 0.0
  %2312 = vmatpush1.msra.mxu0 0.0
  %2313 = vmatprep.subr.mxu0 0.0
  %2314 = vmatpush1.msra.mxu0 0.0
  %2315 = vmatprep.subr.mxu0 0.0
  %2316 = vmatpush1.msra.mxu0 0.0
  %2317 = vmatprep.subr.mxu0 0.0
  %2318 = vmatpush1.msra.mxu0 0.0
  %2319 = vmatprep.subr.mxu0 0.0
  %2320 = vmatpush1.msra.mxu0 0.0
  %2321 = vmatprep.subr.mxu0 0.0
  %2322 = vmatpush1.msra.mxu0 0.0
  %2323 = vmatprep.subr.mxu0 0.0
  %2324 = vmatpush1.msra.mxu0 0.0
  %2325 = vmatprep.subr.mxu0 0.0
  %2326 = vmatpush1.msra.mxu0 0.0
  %2327 = vmatprep.subr.mxu0 0.0
  %2328 = vmatpush1.msra.mxu0 0.0
  %2329 = vmatprep.subr.mxu0 0.0
  %2330 = vmatpush1.msra.mxu0 0.0
  %2331 = vmatprep.subr.mxu0 0.0
  %2332 = vmatpush1.msra.mxu0 0.0
  %2333 = vmatprep.subr.mxu0 0.0
  %2334 = vmatpush1.msra.mxu0 0.0
  %2335 = vmatprep.subr.mxu0 %v2301
  %2336 = vmatpush1.msra.mxu0 %v2299
  %2337 = vmatprep.subr.mxu0 0.0
  %2338 = vmatpush2.msra.mxu0 0.0
  %2339 = vmatprep.subr.mxu0 0.0
  %2340 = vmatpush2.msra.mxu0 0.0
  %2341 = vmatprep.subr.mxu0 0.0
  %2342 = vmatpush2.msra.mxu0 0.0
  %2343 = vmatprep.subr.mxu0 0.0
  %2344 = vmatpush2.msra.mxu0 0.0
  %2345 = vmatprep.subr.mxu0 0.0
  %2346 = vmatpush2.msra.mxu0 0.0
  %2347 = vmatprep.subr.mxu0 0.0
  %2348 = vmatpush2.msra.mxu0 0.0
  %2349 = vmatprep.subr.mxu0 0.0
  %2350 = vmatpush2.msra.mxu0 0.0
  %2351 = vmatprep.subr.mxu0 0.0
  %2352 = vmatpush2.msra.mxu0 0.0
  %2353 = vmatprep.subr.mxu0 0.0
  %2354 = vmatpush2.msra.mxu0 0.0
  %2355 = vmatprep.subr.mxu0 0.0
  %2356 = vmatpush2.msra.mxu0 0.0
  %2357 = vmatprep.subr.mxu0 0.0
  %2358 = vmatpush2.msra.mxu0 0.0
  %2359 = vmatprep.subr.mxu0 0.0
  %2360 = vmatpush2.msra.mxu0 0.0
  %2361 = vmatprep.subr.mxu0 0.0
  %2362 = vmatpush2.msra.mxu0 0.0
  %2363 = vmatprep.subr.mxu0 0.0
  %2364 = vmatpush2.msra.mxu0 0.0
  %2365 = vmatprep.subr.mxu0 0.0
  %2366 = vmatpush2.msra.mxu0 0.0
  %2367 = vmatprep.subr.mxu0 0.0
  %2368 = vmatpush2.msra.mxu0 0.0
  %2369 = vmatprep.mubr.f32.mxu0 0.0
  %2370 = vmatmul.mubr.f32.gmra.mxu0 %v2297
  %v2371 = vpop.f32.mrf.mxu0
  %v2372 = vadd.f32 0.0, %v2371
  %v2373 = vpop.f32.mrf.mxu0
  %v2374 = vadd.f32 0.0, %v2373
  %2375 = vdwg.mxu0
  %2376 = vmatprep.subr.mxu0 0.0
  %2377 = vmatpush1.msra.mxu0 0.0
  %2378 = vmatprep.subr.mxu0 0.0
  %2379 = vmatpush1.msra.mxu0 0.0
  %2380 = vmatprep.subr.mxu0 0.0
  %2381 = vmatpush1.msra.mxu0 0.0
  %2382 = vmatprep.subr.mxu0 0.0
  %2383 = vmatpush1.msra.mxu0 0.0
  %2384 = vmatprep.subr.mxu0 0.0
  %2385 = vmatpush1.msra.mxu0 0.0
  %2386 = vmatprep.subr.mxu0 0.0
  %2387 = vmatpush1.msra.mxu0 0.0
  %2388 = vmatprep.subr.mxu0 0.0
  %2389 = vmatpush1.msra.mxu0 0.0
  %2390 = vmatprep.subr.mxu0 0.0
  %2391 = vmatpush1.msra.mxu0 0.0
  %2392 = vmatprep.subr.mxu0 0.0
  %2393 = vmatpush1.msra.mxu0 0.0
  %2394 = vmatprep.subr.mxu0 0.0
  %2395 = vmatpush1.msra.mxu0 0.0
  %2396 = vmatprep.subr.mxu0 0.0
  %2397 = vmatpush1.msra.mxu0 0.0
  %2398 = vmatprep.subr.mxu0 0.0
  %2399 = vmatpush1.msra.mxu0 0.0
  %2400 = vmatprep.subr.mxu0 0.0
  %2401 = vmatpush1.msra.mxu0 0.0
  %2402 = vmatprep.subr.mxu0 0.0
  %2403 = vmatpush1.msra.mxu0 0.0
  %2404 = vmatprep.subr.mxu0 0.0
  %2405 = vmatpush1.msra.mxu0 0.0
  %2406 = vmatprep.subr.mxu0 0.0
  %2407 = vmatpush1.msra.mxu0 %v2303
  %2408 = vmatprep.subr.mxu0 0.0
  %2409 = vmatpush2.msra.mxu0 0.0
  %2410 = vmatprep.subr.mxu0 0.0
  %2411 = vmatpush2.msra.mxu0 0.0
  %2412 = vmatprep.subr.mxu0 0.0
  %2413 = vmatpush2.msra.mxu0 0.0
  %2414 = vmatprep.subr.mxu0 0.0
  %2415 = vmatpush2.msra.mxu0 0.0
  %2416 = vmatprep.subr.mxu0 0.0
  %2417 = vmatpush2.msra.mxu0 0.0
  %2418 = vmatprep.subr.mxu0 0.0
  %2419 = vmatpush2.msra.mxu0 0.0
  %2420 = vmatprep.subr.mxu0 0.0
  %2421 = vmatpush2.msra.mxu0 0.0
  %2422 = vmatprep.subr.mxu0 0.0
  %2423 = vmatpush2.msra.mxu0 0.0
  %2424 = vmatprep.subr.mxu0 0.0
  %2425 = vmatpush2.msra.mxu0 0.0
  %2426 = vmatprep.subr.mxu0 0.0
  %2427 = vmatpush2.msra.mxu0 0.0
  %2428 = vmatprep.subr.mxu0 0.0
  %2429 = vmatpush2.msra.mxu0 0.0
  %2430 = vmatprep.subr.mxu0 0.0
  %2431 = vmatpush2.msra.mxu0 0.0
  %2432 = vmatprep.subr.mxu0 0.0
  %2433 = vmatpush2.msra.mxu0 0.0
  %2434 = vmatprep.subr.mxu0 0.0
  %2435 = vmatpush2.msra.mxu0 0.0
  %2436 = vmatprep.subr.mxu0 0.0
  %2437 = vmatpush2.msra.mxu0 0.0
  %2438 = vmatprep.subr.mxu0 0.0
  %2439 = vmatpush2.msra.mxu0 0.0
  %2440 = vmatprep.mubr.f32.mxu0 0.0
  %2441 = vmatmul.mubr.f32.gmra.mxu0 %v2297
  %v2442 = vpop.f32.mrf.mxu0
  %v2443 = vadd.f32 0.0, %v2442
  %v2444 = vpop.f32.mrf.mxu0
  %2445 = vdwg.mxu0
  %v2446 = vadd.f32 %v2284, %v2372
  %v2447 = vadd.f32 %v2285, %v2374
  %v2448 = vadd.f32 %v2286, %v2443
  %v2449 = vld [vmem:[%s986] sm:$0xff]
  %2450 = vrot.lane.b32.xlu0 %v1486, 92
  %v2451 = vpop.permute.xlu0 %2450
  %2452 = vrot.lane.b32.xlu0 %v1492, 92
  %v2453 = vpop.permute.xlu0 %2452
  %2454 = vrot.lane.b32.xlu0 %v1487, 92
  %v2455 = vpop.permute.xlu0 %2454
  %v2456 = vsel %vm994, %v2451, %v2453
  %v2457 = vsel %vm994, %v2453, %v2455
  %v2459 = vsel %vm28, %v2449, 0
  %v2461 = vsel %vm32, %v2456, 0
  %v2463 = vsel %vm32, %v2457, 0
  %v2465 = vsel %vm32, %v2455, 0
  %2467 = vmatprep.subr.mxu0 0.0
  %2468 = vmatpush1.msra.mxu0 0.0
  %2469 = vmatprep.subr.mxu0 0.0
  %2470 = vmatpush1.msra.mxu0 0.0
  %2471 = vmatprep.subr.mxu0 0.0
  %2472 = vmatpush1.msra.mxu0 0.0
  %2473 = vmatprep.subr.mxu0 0.0
  %2474 = vmatpush1.msra.mxu0 0.0
  %2475 = vmatprep.subr.mxu0 0.0
  %2476 = vmatpush1.msra.mxu0 0.0
  %2477 = vmatprep.subr.mxu0 0.0
  %2478 = vmatpush1.msra.mxu0 0.0
  %2479 = vmatprep.subr.mxu0 0.0
  %2480 = vmatpush1.msra.mxu0 0.0
  %2481 = vmatprep.subr.mxu0 0.0
  %2482 = vmatpush1.msra.mxu0 0.0
  %2483 = vmatprep.subr.mxu0 0.0
  %2484 = vmatpush1.msra.mxu0 0.0
  %2485 = vmatprep.subr.mxu0 0.0
  %2486 = vmatpush1.msra.mxu0 0.0
  %2487 = vmatprep.subr.mxu0 0.0
  %2488 = vmatpush1.msra.mxu0 0.0
  %2489 = vmatprep.subr.mxu0 0.0
  %2490 = vmatpush1.msra.mxu0 0.0
  %2491 = vmatprep.subr.mxu0 0.0
  %2492 = vmatpush1.msra.mxu0 0.0
  %2493 = vmatprep.subr.mxu0 0.0
  %2494 = vmatpush1.msra.mxu0 0.0
  %2495 = vmatprep.subr.mxu0 0.0
  %2496 = vmatpush1.msra.mxu0 0.0
  %2497 = vmatprep.subr.mxu0 %v2463
  %2498 = vmatpush1.msra.mxu0 %v2461
  %2499 = vmatprep.subr.mxu0 0.0
  %2500 = vmatpush2.msra.mxu0 0.0
  %2501 = vmatprep.subr.mxu0 0.0
  %2502 = vmatpush2.msra.mxu0 0.0
  %2503 = vmatprep.subr.mxu0 0.0
  %2504 = vmatpush2.msra.mxu0 0.0
  %2505 = vmatprep.subr.mxu0 0.0
  %2506 = vmatpush2.msra.mxu0 0.0
  %2507 = vmatprep.subr.mxu0 0.0
  %2508 = vmatpush2.msra.mxu0 0.0
  %2509 = vmatprep.subr.mxu0 0.0
  %2510 = vmatpush2.msra.mxu0 0.0
  %2511 = vmatprep.subr.mxu0 0.0
  %2512 = vmatpush2.msra.mxu0 0.0
  %2513 = vmatprep.subr.mxu0 0.0
  %2514 = vmatpush2.msra.mxu0 0.0
  %2515 = vmatprep.subr.mxu0 0.0
  %2516 = vmatpush2.msra.mxu0 0.0
  %2517 = vmatprep.subr.mxu0 0.0
  %2518 = vmatpush2.msra.mxu0 0.0
  %2519 = vmatprep.subr.mxu0 0.0
  %2520 = vmatpush2.msra.mxu0 0.0
  %2521 = vmatprep.subr.mxu0 0.0
  %2522 = vmatpush2.msra.mxu0 0.0
  %2523 = vmatprep.subr.mxu0 0.0
  %2524 = vmatpush2.msra.mxu0 0.0
  %2525 = vmatprep.subr.mxu0 0.0
  %2526 = vmatpush2.msra.mxu0 0.0
  %2527 = vmatprep.subr.mxu0 0.0
  %2528 = vmatpush2.msra.mxu0 0.0
  %2529 = vmatprep.subr.mxu0 0.0
  %2530 = vmatpush2.msra.mxu0 0.0
  %2531 = vmatprep.mubr.f32.mxu0 0.0
  %2532 = vmatmul.mubr.f32.gmra.mxu0 %v2459
  %v2533 = vpop.f32.mrf.mxu0
  %v2534 = vadd.f32 0.0, %v2533
  %v2535 = vpop.f32.mrf.mxu0
  %v2536 = vadd.f32 0.0, %v2535
  %2537 = vdwg.mxu0
  %2538 = vmatprep.subr.mxu0 0.0
  %2539 = vmatpush1.msra.mxu0 0.0
  %2540 = vmatprep.subr.mxu0 0.0
  %2541 = vmatpush1.msra.mxu0 0.0
  %2542 = vmatprep.subr.mxu0 0.0
  %2543 = vmatpush1.msra.mxu0 0.0
  %2544 = vmatprep.subr.mxu0 0.0
  %2545 = vmatpush1.msra.mxu0 0.0
  %2546 = vmatprep.subr.mxu0 0.0
  %2547 = vmatpush1.msra.mxu0 0.0
  %2548 = vmatprep.subr.mxu0 0.0
  %2549 = vmatpush1.msra.mxu0 0.0
  %2550 = vmatprep.subr.mxu0 0.0
  %2551 = vmatpush1.msra.mxu0 0.0
  %2552 = vmatprep.subr.mxu0 0.0
  %2553 = vmatpush1.msra.mxu0 0.0
  %2554 = vmatprep.subr.mxu0 0.0
  %2555 = vmatpush1.msra.mxu0 0.0
  %2556 = vmatprep.subr.mxu0 0.0
  %2557 = vmatpush1.msra.mxu0 0.0
  %2558 = vmatprep.subr.mxu0 0.0
  %2559 = vmatpush1.msra.mxu0 0.0
  %2560 = vmatprep.subr.mxu0 0.0
  %2561 = vmatpush1.msra.mxu0 0.0
  %2562 = vmatprep.subr.mxu0 0.0
  %2563 = vmatpush1.msra.mxu0 0.0
  %2564 = vmatprep.subr.mxu0 0.0
  %2565 = vmatpush1.msra.mxu0 0.0
  %2566 = vmatprep.subr.mxu0 0.0
  %2567 = vmatpush1.msra.mxu0 0.0
  %2568 = vmatprep.subr.mxu0 0.0
  %2569 = vmatpush1.msra.mxu0 %v2465
  %2570 = vmatprep.subr.mxu0 0.0
  %2571 = vmatpush2.msra.mxu0 0.0
  %2572 = vmatprep.subr.mxu0 0.0
  %2573 = vmatpush2.msra.mxu0 0.0
  %2574 = vmatprep.subr.mxu0 0.0
  %2575 = vmatpush2.msra.mxu0 0.0
  %2576 = vmatprep.subr.mxu0 0.0
  %2577 = vmatpush2.msra.mxu0 0.0
  %2578 = vmatprep.subr.mxu0 0.0
  %2579 = vmatpush2.msra.mxu0 0.0
  %2580 = vmatprep.subr.mxu0 0.0
  %2581 = vmatpush2.msra.mxu0 0.0
  %2582 = vmatprep.subr.mxu0 0.0
  %2583 = vmatpush2.msra.mxu0 0.0
  %2584 = vmatprep.subr.mxu0 0.0
  %2585 = vmatpush2.msra.mxu0 0.0
  %2586 = vmatprep.subr.mxu0 0.0
  %2587 = vmatpush2.msra.mxu0 0.0
  %2588 = vmatprep.subr.mxu0 0.0
  %2589 = vmatpush2.msra.mxu0 0.0
  %2590 = vmatprep.subr.mxu0 0.0
  %2591 = vmatpush2.msra.mxu0 0.0
  %2592 = vmatprep.subr.mxu0 0.0
  %2593 = vmatpush2.msra.mxu0 0.0
  %2594 = vmatprep.subr.mxu0 0.0
  %2595 = vmatpush2.msra.mxu0 0.0
  %2596 = vmatprep.subr.mxu0 0.0
  %2597 = vmatpush2.msra.mxu0 0.0
  %2598 = vmatprep.subr.mxu0 0.0
  %2599 = vmatpush2.msra.mxu0 0.0
  %2600 = vmatprep.subr.mxu0 0.0
  %2601 = vmatpush2.msra.mxu0 0.0
  %2602 = vmatprep.mubr.f32.mxu0 0.0
  %2603 = vmatmul.mubr.f32.gmra.mxu0 %v2459
  %v2604 = vpop.f32.mrf.mxu0
  %v2605 = vadd.f32 0.0, %v2604
  %v2606 = vpop.f32.mrf.mxu0
  %2607 = vdwg.mxu0
  %v2608 = vadd.f32 %v2446, %v2534
  %v2609 = vadd.f32 %v2447, %v2536
  %v2610 = vadd.f32 %v2448, %v2605
  %v2611 = vld [vmem:[%s1150] sm:$0xff]
  %2612 = vrot.lane.b32.xlu0 %v1486, 91
  %v2613 = vpop.permute.xlu0 %2612
  %2614 = vrot.lane.b32.xlu0 %v1492, 91
  %v2615 = vpop.permute.xlu0 %2614
  %2616 = vrot.lane.b32.xlu0 %v1487, 91
  %v2617 = vpop.permute.xlu0 %2616
  %v2618 = vsel %vm1158, %v2613, %v2615
  %v2619 = vsel %vm1158, %v2615, %v2617
  %v2621 = vsel %vm28, %v2611, 0
  %v2623 = vsel %vm32, %v2618, 0
  %v2625 = vsel %vm32, %v2619, 0
  %v2627 = vsel %vm32, %v2617, 0
  %2629 = vmatprep.subr.mxu0 0.0
  %2630 = vmatpush1.msra.mxu0 0.0
  %2631 = vmatprep.subr.mxu0 0.0
  %2632 = vmatpush1.msra.mxu0 0.0
  %2633 = vmatprep.subr.mxu0 0.0
  %2634 = vmatpush1.msra.mxu0 0.0
  %2635 = vmatprep.subr.mxu0 0.0
  %2636 = vmatpush1.msra.mxu0 0.0
  %2637 = vmatprep.subr.mxu0 0.0
  %2638 = vmatpush1.msra.mxu0 0.0
  %2639 = vmatprep.subr.mxu0 0.0
  %2640 = vmatpush1.msra.mxu0 0.0
  %2641 = vmatprep.subr.mxu0 0.0
  %2642 = vmatpush1.msra.mxu0 0.0
  %2643 = vmatprep.subr.mxu0 0.0
  %2644 = vmatpush1.msra.mxu0 0.0
  %2645 = vmatprep.subr.mxu0 0.0
  %2646 = vmatpush1.msra.mxu0 0.0
  %2647 = vmatprep.subr.mxu0 0.0
  %2648 = vmatpush1.msra.mxu0 0.0
  %2649 = vmatprep.subr.mxu0 0.0
  %2650 = vmatpush1.msra.mxu0 0.0
  %2651 = vmatprep.subr.mxu0 0.0
  %2652 = vmatpush1.msra.mxu0 0.0
  %2653 = vmatprep.subr.mxu0 0.0
  %2654 = vmatpush1.msra.mxu0 0.0
  %2655 = vmatprep.subr.mxu0 0.0
  %2656 = vmatpush1.msra.mxu0 0.0
  %2657 = vmatprep.subr.mxu0 0.0
  %2658 = vmatpush1.msra.mxu0 0.0
  %2659 = vmatprep.subr.mxu0 %v2625
  %2660 = vmatpush1.msra.mxu0 %v2623
  %2661 = vmatprep.subr.mxu0 0.0
  %2662 = vmatpush2.msra.mxu0 0.0
  %2663 = vmatprep.subr.mxu0 0.0
  %2664 = vmatpush2.msra.mxu0 0.0
  %2665 = vmatprep.subr.mxu0 0.0
  %2666 = vmatpush2.msra.mxu0 0.0
  %2667 = vmatprep.subr.mxu0 0.0
  %2668 = vmatpush2.msra.mxu0 0.0
  %2669 = vmatprep.subr.mxu0 0.0
  %2670 = vmatpush2.msra.mxu0 0.0
  %2671 = vmatprep.subr.mxu0 0.0
  %2672 = vmatpush2.msra.mxu0 0.0
  %2673 = vmatprep.subr.mxu0 0.0
  %2674 = vmatpush2.msra.mxu0 0.0
  %2675 = vmatprep.subr.mxu0 0.0
  %2676 = vmatpush2.msra.mxu0 0.0
  %2677 = vmatprep.subr.mxu0 0.0
  %2678 = vmatpush2.msra.mxu0 0.0
  %2679 = vmatprep.subr.mxu0 0.0
  %2680 = vmatpush2.msra.mxu0 0.0
  %2681 = vmatprep.subr.mxu0 0.0
  %2682 = vmatpush2.msra.mxu0 0.0
  %2683 = vmatprep.subr.mxu0 0.0
  %2684 = vmatpush2.msra.mxu0 0.0
  %2685 = vmatprep.subr.mxu0 0.0
  %2686 = vmatpush2.msra.mxu0 0.0
  %2687 = vmatprep.subr.mxu0 0.0
  %2688 = vmatpush2.msra.mxu0 0.0
  %2689 = vmatprep.subr.mxu0 0.0
  %2690 = vmatpush2.msra.mxu0 0.0
  %2691 = vmatprep.subr.mxu0 0.0
  %2692 = vmatpush2.msra.mxu0 0.0
  %2693 = vmatprep.mubr.f32.mxu0 0.0
  %2694 = vmatmul.mubr.f32.gmra.mxu0 %v2621
  %v2695 = vpop.f32.mrf.mxu0
  %v2696 = vadd.f32 0.0, %v2695
  %v2697 = vpop.f32.mrf.mxu0
  %v2698 = vadd.f32 0.0, %v2697
  %2699 = vdwg.mxu0
  %2700 = vmatprep.subr.mxu0 0.0
  %2701 = vmatpush1.msra.mxu0 0.0
  %2702 = vmatprep.subr.mxu0 0.0
  %2703 = vmatpush1.msra.mxu0 0.0
  %2704 = vmatprep.subr.mxu0 0.0
  %2705 = vmatpush1.msra.mxu0 0.0
  %2706 = vmatprep.subr.mxu0 0.0
  %2707 = vmatpush1.msra.mxu0 0.0
  %2708 = vmatprep.subr.mxu0 0.0
  %2709 = vmatpush1.msra.mxu0 0.0
  %2710 = vmatprep.subr.mxu0 0.0
  %2711 = vmatpush1.msra.mxu0 0.0
  %2712 = vmatprep.subr.mxu0 0.0
  %2713 = vmatpush1.msra.mxu0 0.0
  %2714 = vmatprep.subr.mxu0 0.0
  %2715 = vmatpush1.msra.mxu0 0.0
  %2716 = vmatprep.subr.mxu0 0.0
  %2717 = vmatpush1.msra.mxu0 0.0
  %2718 = vmatprep.subr.mxu0 0.0
  %2719 = vmatpush1.msra.mxu0 0.0
  %2720 = vmatprep.subr.mxu0 0.0
  %2721 = vmatpush1.msra.mxu0 0.0
  %2722 = vmatprep.subr.mxu0 0.0
  %2723 = vmatpush1.msra.mxu0 0.0
  %2724 = vmatprep.subr.mxu0 0.0
  %2725 = vmatpush1.msra.mxu0 0.0
  %2726 = vmatprep.subr.mxu0 0.0
  %2727 = vmatpush1.msra.mxu0 0.0
  %2728 = vmatprep.subr.mxu0 0.0
  %2729 = vmatpush1.msra.mxu0 0.0
  %2730 = vmatprep.subr.mxu0 0.0
  %2731 = vmatpush1.msra.mxu0 %v2627
  %2732 = vmatprep.subr.mxu0 0.0
  %2733 = vmatpush2.msra.mxu0 0.0
  %2734 = vmatprep.subr.mxu0 0.0
  %2735 = vmatpush2.msra.mxu0 0.0
  %2736 = vmatprep.subr.mxu0 0.0
  %2737 = vmatpush2.msra.mxu0 0.0
  %2738 = vmatprep.subr.mxu0 0.0
  %2739 = vmatpush2.msra.mxu0 0.0
  %2740 = vmatprep.subr.mxu0 0.0
  %2741 = vmatpush2.msra.mxu0 0.0
  %2742 = vmatprep.subr.mxu0 0.0
  %2743 = vmatpush2.msra.mxu0 0.0
  %2744 = vmatprep.subr.mxu0 0.0
  %2745 = vmatpush2.msra.mxu0 0.0
  %2746 = vmatprep.subr.mxu0 0.0
  %2747 = vmatpush2.msra.mxu0 0.0
  %2748 = vmatprep.subr.mxu0 0.0
  %2749 = vmatpush2.msra.mxu0 0.0
  %2750 = vmatprep.subr.mxu0 0.0
  %2751 = vmatpush2.msra.mxu0 0.0
  %2752 = vmatprep.subr.mxu0 0.0
  %2753 = vmatpush2.msra.mxu0 0.0
  %2754 = vmatprep.subr.mxu0 0.0
  %2755 = vmatpush2.msra.mxu0 0.0
  %2756 = vmatprep.subr.mxu0 0.0
  %2757 = vmatpush2.msra.mxu0 0.0
  %2758 = vmatprep.subr.mxu0 0.0
  %2759 = vmatpush2.msra.mxu0 0.0
  %2760 = vmatprep.subr.mxu0 0.0
  %2761 = vmatpush2.msra.mxu0 0.0
  %2762 = vmatprep.subr.mxu0 0.0
  %2763 = vmatpush2.msra.mxu0 0.0
  %2764 = vmatprep.mubr.f32.mxu0 0.0
  %2765 = vmatmul.mubr.f32.gmra.mxu0 %v2621
  %v2766 = vpop.f32.mrf.mxu0
  %v2767 = vadd.f32 0.0, %v2766
  %v2768 = vpop.f32.mrf.mxu0
  %2769 = vdwg.mxu0
  %v2770 = vadd.f32 %v2608, %v2696
  %v2771 = vadd.f32 %v2609, %v2698
  %v2772 = vadd.f32 %v2610, %v2767
  %v2773 = vld [vmem:[%s1314] sm:$0xff]
  %2774 = vrot.lane.b32.xlu0 %v1486, 90
  %v2775 = vpop.permute.xlu0 %2774
  %2776 = vrot.lane.b32.xlu0 %v1492, 90
  %v2777 = vpop.permute.xlu0 %2776
  %2778 = vrot.lane.b32.xlu0 %v1487, 90
  %v2779 = vpop.permute.xlu0 %2778
  %v2780 = vsel %vm1322, %v2775, %v2777
  %v2781 = vsel %vm1322, %v2777, %v2779
  %v2783 = vsel %vm28, %v2773, 0
  %v2785 = vsel %vm32, %v2780, 0
  %v2787 = vsel %vm32, %v2781, 0
  %v2789 = vsel %vm32, %v2779, 0
  %2791 = vmatprep.subr.mxu0 0.0
  %2792 = vmatpush1.msra.mxu0 0.0
  %2793 = vmatprep.subr.mxu0 0.0
  %2794 = vmatpush1.msra.mxu0 0.0
  %2795 = vmatprep.subr.mxu0 0.0
  %2796 = vmatpush1.msra.mxu0 0.0
  %2797 = vmatprep.subr.mxu0 0.0
  %2798 = vmatpush1.msra.mxu0 0.0
  %2799 = vmatprep.subr.mxu0 0.0
  %2800 = vmatpush1.msra.mxu0 0.0
  %2801 = vmatprep.subr.mxu0 0.0
  %2802 = vmatpush1.msra.mxu0 0.0
  %2803 = vmatprep.subr.mxu0 0.0
  %2804 = vmatpush1.msra.mxu0 0.0
  %2805 = vmatprep.subr.mxu0 0.0
  %2806 = vmatpush1.msra.mxu0 0.0
  %2807 = vmatprep.subr.mxu0 0.0
  %2808 = vmatpush1.msra.mxu0 0.0
  %2809 = vmatprep.subr.mxu0 0.0
  %2810 = vmatpush1.msra.mxu0 0.0
  %2811 = vmatprep.subr.mxu0 0.0
  %2812 = vmatpush1.msra.mxu0 0.0
  %2813 = vmatprep.subr.mxu0 0.0
  %2814 = vmatpush1.msra.mxu0 0.0
  %2815 = vmatprep.subr.mxu0 0.0
  %2816 = vmatpush1.msra.mxu0 0.0
  %2817 = vmatprep.subr.mxu0 0.0
  %2818 = vmatpush1.msra.mxu0 0.0
  %2819 = vmatprep.subr.mxu0 0.0
  %2820 = vmatpush1.msra.mxu0 0.0
  %2821 = vmatprep.subr.mxu0 %v2787
  %2822 = vmatpush1.msra.mxu0 %v2785
  %2823 = vmatprep.subr.mxu0 0.0
  %2824 = vmatpush2.msra.mxu0 0.0
  %2825 = vmatprep.subr.mxu0 0.0
  %2826 = vmatpush2.msra.mxu0 0.0
  %2827 = vmatprep.subr.mxu0 0.0
  %2828 = vmatpush2.msra.mxu0 0.0
  %2829 = vmatprep.subr.mxu0 0.0
  %2830 = vmatpush2.msra.mxu0 0.0
  %2831 = vmatprep.subr.mxu0 0.0
  %2832 = vmatpush2.msra.mxu0 0.0
  %2833 = vmatprep.subr.mxu0 0.0
  %2834 = vmatpush2.msra.mxu0 0.0
  %2835 = vmatprep.subr.mxu0 0.0
  %2836 = vmatpush2.msra.mxu0 0.0
  %2837 = vmatprep.subr.mxu0 0.0
  %2838 = vmatpush2.msra.mxu0 0.0
  %2839 = vmatprep.subr.mxu0 0.0
  %2840 = vmatpush2.msra.mxu0 0.0
  %2841 = vmatprep.subr.mxu0 0.0
  %2842 = vmatpush2.msra.mxu0 0.0
  %2843 = vmatprep.subr.mxu0 0.0
  %2844 = vmatpush2.msra.mxu0 0.0
  %2845 = vmatprep.subr.mxu0 0.0
  %2846 = vmatpush2.msra.mxu0 0.0
  %2847 = vmatprep.subr.mxu0 0.0
  %2848 = vmatpush2.msra.mxu0 0.0
  %2849 = vmatprep.subr.mxu0 0.0
  %2850 = vmatpush2.msra.mxu0 0.0
  %2851 = vmatprep.subr.mxu0 0.0
  %2852 = vmatpush2.msra.mxu0 0.0
  %2853 = vmatprep.subr.mxu0 0.0
  %2854 = vmatpush2.msra.mxu0 0.0
  %2855 = vmatprep.mubr.f32.mxu0 0.0
  %2856 = vmatmul.mubr.f32.gmra.mxu0 %v2783
  %v2857 = vpop.f32.mrf.mxu0
  %v2858 = vadd.f32 0.0, %v2857
  %v2859 = vpop.f32.mrf.mxu0
  %v2860 = vadd.f32 0.0, %v2859
  %2861 = vdwg.mxu0
  %2862 = vmatprep.subr.mxu0 0.0
  %2863 = vmatpush1.msra.mxu0 0.0
  %2864 = vmatprep.subr.mxu0 0.0
  %2865 = vmatpush1.msra.mxu0 0.0
  %2866 = vmatprep.subr.mxu0 0.0
  %2867 = vmatpush1.msra.mxu0 0.0
  %2868 = vmatprep.subr.mxu0 0.0
  %2869 = vmatpush1.msra.mxu0 0.0
  %2870 = vmatprep.subr.mxu0 0.0
  %2871 = vmatpush1.msra.mxu0 0.0
  %2872 = vmatprep.subr.mxu0 0.0
  %2873 = vmatpush1.msra.mxu0 0.0
  %2874 = vmatprep.subr.mxu0 0.0
  %2875 = vmatpush1.msra.mxu0 0.0
  %2876 = vmatprep.subr.mxu0 0.0
  %2877 = vmatpush1.msra.mxu0 0.0
  %2878 = vmatprep.subr.mxu0 0.0
  %2879 = vmatpush1.msra.mxu0 0.0
  %2880 = vmatprep.subr.mxu0 0.0
  %2881 = vmatpush1.msra.mxu0 0.0
  %2882 = vmatprep.subr.mxu0 0.0
  %2883 = vmatpush1.msra.mxu0 0.0
  %2884 = vmatprep.subr.mxu0 0.0
  %2885 = vmatpush1.msra.mxu0 0.0
  %2886 = vmatprep.subr.mxu0 0.0
  %2887 = vmatpush1.msra.mxu0 0.0
  %2888 = vmatprep.subr.mxu0 0.0
  %2889 = vmatpush1.msra.mxu0 0.0
  %2890 = vmatprep.subr.mxu0 0.0
  %2891 = vmatpush1.msra.mxu0 0.0
  %2892 = vmatprep.subr.mxu0 0.0
  %2893 = vmatpush1.msra.mxu0 %v2789
  %2894 = vmatprep.subr.mxu0 0.0
  %2895 = vmatpush2.msra.mxu0 0.0
  %2896 = vmatprep.subr.mxu0 0.0
  %2897 = vmatpush2.msra.mxu0 0.0
  %2898 = vmatprep.subr.mxu0 0.0
  %2899 = vmatpush2.msra.mxu0 0.0
  %2900 = vmatprep.subr.mxu0 0.0
  %2901 = vmatpush2.msra.mxu0 0.0
  %2902 = vmatprep.subr.mxu0 0.0
  %2903 = vmatpush2.msra.mxu0 0.0
  %2904 = vmatprep.subr.mxu0 0.0
  %2905 = vmatpush2.msra.mxu0 0.0
  %2906 = vmatprep.subr.mxu0 0.0
  %2907 = vmatpush2.msra.mxu0 0.0
  %2908 = vmatprep.subr.mxu0 0.0
  %2909 = vmatpush2.msra.mxu0 0.0
  %2910 = vmatprep.subr.mxu0 0.0
  %2911 = vmatpush2.msra.mxu0 0.0
  %2912 = vmatprep.subr.mxu0 0.0
  %2913 = vmatpush2.msra.mxu0 0.0
  %2914 = vmatprep.subr.mxu0 0.0
  %2915 = vmatpush2.msra.mxu0 0.0
  %2916 = vmatprep.subr.mxu0 0.0
  %2917 = vmatpush2.msra.mxu0 0.0
  %2918 = vmatprep.subr.mxu0 0.0
  %2919 = vmatpush2.msra.mxu0 0.0
  %2920 = vmatprep.subr.mxu0 0.0
  %2921 = vmatpush2.msra.mxu0 0.0
  %2922 = vmatprep.subr.mxu0 0.0
  %2923 = vmatpush2.msra.mxu0 0.0
  %2924 = vmatprep.subr.mxu0 0.0
  %2925 = vmatpush2.msra.mxu0 0.0
  %2926 = vmatprep.mubr.f32.mxu0 0.0
  %2927 = vmatmul.mubr.f32.gmra.mxu0 %v2783
  %v2928 = vpop.f32.mrf.mxu0
  %v2929 = vadd.f32 0.0, %v2928
  %v2930 = vpop.f32.mrf.mxu0
  %2931 = vdwg.mxu0
  %v2932 = vadd.f32 %v2770, %v2858
  %v2933 = vadd.f32 %v2771, %v2860
  %v2934 = vadd.f32 %v2772, %v2929
  %v2935 = vmax.f32 %v2932, 0.0
  %v2936 = vmax.f32 %v2933, 0.0
  %v2937 = vmax.f32 %v2934, 0.0
  %s2938 = scalar_lea.vmem %s2, 24
  %2939 = vst [vmem:[%s2938] sm:$0xff] %v2935
  %2940 = vst [vmem:[%s2938 + $0x8] sm:$0xff] %v2936
  %2941 = vst.msk [vmem:[%s2938 + $0x10] sm:$0xff] %vm1483, %v2937
  // Predicated region
  $region10: #{basic_conv_forward.1} parent=0 // pred_check
    _
  $region11: #{basic_conv_forward.1} parent=0 // pred_check_branch
    %2943 = sbr.rel (0) target = $region13
  $region12: #{basic_conv_forward.1} parent=0 // pred_region
    _
  $region13: #{basic_conv_forward.1} parent=0 // pred_fallthru
    _
  // Predicated region
  $region14: #{basic_conv_forward.1} parent=0 // pred_check
    _
  $region15: #{basic_conv_forward.1} parent=0 // pred_check_branch
    %2945 = sbr.rel (0) target = $region17
  $region16: #{basic_conv_forward.1} parent=0 // pred_region
    _
  $region17: #{basic_conv_forward.1} parent=0 // pred_fallthru
    _

</llo_original>
